<compile_context>
chip_gen: v5e
topology: v5e:2x2
jax: 0.10.0
libtpu: 0.0.40
codegen_flags: <defaults>
</compile_context>

<pallas_src>
import functools

import jax
import jax.numpy as jnp
from jax import lax
from jax.experimental import pallas as pl
from jax.experimental.pallas import tpu as pltpu


# ----------------------------------------------------------------------------
# Pallas kernel: full-K GEMM tile with fused bias + activation.
#   o = act(x @ w + b)[:, :n_true]
# ----------------------------------------------------------------------------
def _gemm_bias_act_kernel(x_ref, w_ref, b_ref, o_ref, *, act, n_true):
    acc = jnp.dot(x_ref[...], w_ref[...], preferred_element_type=jnp.float32)
    acc = acc + b_ref[...]                       # (tm, Npad) + (1, Npad), f32
    if act == "relu":
        acc = jnp.maximum(acc, 0.0)
    elif act == "tanh":
        acc = jnp.tanh(acc)                      # EUP slot, essentially free
    # Store only the true output width (3 / 64 / 128 lanes).
    o_ref[...] = acc[:, :n_true].astype(o_ref.dtype)


def _round_up(x, m):
    return ((x + m - 1) // m) * m


def gemm_bias_act(x, w, b, act, *, out_dtype, compute_dtype):
    """Batched GEMM:  act(x @ w + b).

    x: (B, M, K)   -> cast to `compute_dtype` for the MXU (bf16 in production)
    w: (B, K, N)   -> cast to `compute_dtype`
    b: (N,)        -> kept float32 (epilogue in f32, v5e-safe)
    returns (B, M, N) in `out_dtype` (true N width, no lane padding in HBM).
    """
    B, M, K = x.shape
    _, _, N = w.shape

    Kp = _round_up(K, 128)
    Npad = _round_up(N, 128)
    # This net: K <= 1024, Cout <= 128 -> a full-K, full-N tile is tiny
    # (bf16 x tile 512x1024 = 1 MB), so no reduction / N grid axis is needed.
    assert Kp <= 2048 and Npad <= 512, "tile plan assumes small K/N (CompNet)"

    # M tiling: 512 (multiple of 256, v6e/v7x MXU friendly) at real sizes;
    # at small M use a 16-aligned tile (bf16 sublane packing) and give the
    # single-phase GEMMs at least 2 tiles so v7x megacore has work per core.
    if M > 512:
        tm = 512
    else:
        tm = _round_up(M, 16)
        if B == 1 and M >= 32:
            tm = _round_up(-(-M // 2), 16)
    Mp = _round_up(M, tm)

    if x.dtype != compute_dtype:
        x = x.astype(compute_dtype)
    if w.dtype != compute_dtype:
        w = w.astype(compute_dtype)
    if (Mp, Kp) != (M, K):
        # Padded M rows compute act(bias), not zeros -- they are sliced off
        # below and must never be consumed by a fused downstream stage.
        x = jnp.pad(x, ((0, 0), (0, Mp - M), (0, Kp - K)))
    if (Kp, Npad) != (K, N):
        w = jnp.pad(w, ((0, 0), (0, Kp - K), (0, Npad - N)))
    b2 = b.astype(jnp.float32).reshape(1, N)
    if Npad != N:
        b2 = jnp.pad(b2, ((0, 0), (0, Npad - N)))

    grid = (B, Mp // tm)
    kernel = functools.partial(_gemm_bias_act_kernel, act=act, n_true=N)

    out = pl.pallas_call(
        kernel,
        out_shape=jax.ShapeDtypeStruct((B, Mp, N), out_dtype),
        grid=grid,
        in_specs=[
            pl.BlockSpec((None, tm, Kp), lambda p, i: (p, i, 0)),
            # Weight / bias block index is constant across the M axis ->
            # Pallas skips re-DMAing them between consecutive steps.
            pl.BlockSpec((None, Kp, Npad), lambda p, i: (p, 0, 0)),
            pl.BlockSpec((1, Npad), lambda p, i: (0, 0)),
        ],
        out_specs=pl.BlockSpec((None, tm, N), lambda p, i: (p, i, 0)),
        compiler_params=pltpu.CompilerParams(
            dimension_semantics=("parallel", "parallel"),
            vmem_limit_bytes=32 * 1024 * 1024,
        ),
    )(x, w, b2)

    if Mp != M:
        out = out[:, :M, :]
    return out


# ----------------------------------------------------------------------------
# NHWC im2col glue (plain JAX).  Patch ordering is (kh, kw, Cin), matching the
# weight reshape used below.
# TODO(synk): fuse this into the GEMM kernel (k*k shifted dots on a halo
#             block) to remove the patch HBM round-trip.
# ----------------------------------------------------------------------------
def im2col_nhwc(x, k, stride, pad):
    N, H, W, C = x.shape
    if pad:
        x = jnp.pad(x, ((0, 0), (pad, pad), (pad, pad), (0, 0)))
    OH = (H + 2 * pad - k) // stride + 1
    OW = (W + 2 * pad - k) // stride + 1
    cols = []
    for i in range(k):
        for j in range(k):
            cols.append(
                x[:, i : i + stride * OH : stride, j : j + stride * OW : stride, :]
            )
    col = jnp.concatenate(cols, axis=-1)          # (N, OH, OW, k*k*C)
    return col.reshape(N * OH * OW, k * k * C), OH, OW


def conv2d_nhwc(x, w, b, stride, pad, act, compute_dtype, out_dtype=None):
    """x: (N, H, W, Cin) NHWC; w: (Cout, Cin, k, k) PyTorch layout."""
    out_dtype = compute_dtype if out_dtype is None else out_dtype
    N = x.shape[0]
    Cout, Cin, k, _ = w.shape
    patches, OH, OW = im2col_nhwc(x, k, stride, pad)
    w2d = w.transpose(2, 3, 1, 0).reshape(k * k * Cin, Cout)   # (kh,kw,Cin) rows
    out = gemm_bias_act(patches[None], w2d[None], b, act,
                        out_dtype=out_dtype, compute_dtype=compute_dtype)
    return out[0].reshape(N, OH, OW, Cout)


def conv_transpose2d_nhwc(x, w_t, b, act, compute_dtype, out_dtype=None):
    """PyTorch ConvTranspose2d(k=4, s=2, p=1) via sub-pixel decomposition.

    x: (N, H, W, Cin) NHWC;  w_t: (Cin, Cout, 4, 4).
    Output: (N, 2H, 2W, Cout).
    """
    out_dtype = compute_dtype if out_dtype is None else out_dtype
    N, H, W, Cin = x.shape
    Cout = w_t.shape[1]
    assert w_t.shape[2] == 4 and w_t.shape[3] == 4

    xp = jnp.pad(x, ((0, 0), (1, 1), (1, 1), (0, 0)))          # (N, H+2, W+2, Cin)

    patch_list, weight_list = [], []
    for ry in (0, 1):
        for rx in (0, 1):
            xph = xp[:, ry : ry + H + 1, rx : rx + W + 1, :]
            p, _, _ = im2col_nhwc(xph, 2, 1, 0)                # (N*H*W, 4*Cin)
            patch_list.append(p)
            # taps ky = 3-ry-2*da, kx = 3-rx-2*db  (da, db in {0,1})
            w_sub = w_t[:, :, (3 - ry) :: -2, (3 - rx) :: -2]  # (Cin, Cout, 2, 2)
            w_sub = w_sub.transpose(2, 3, 0, 1).reshape(4 * Cin, Cout)
            weight_list.append(w_sub)

    patches = jnp.stack(patch_list, axis=0)                    # (4, N*H*W, 4*Cin)
    weights = jnp.stack(weight_list, axis=0)                   # (4, 4*Cin, Cout)
    out = gemm_bias_act(patches, weights, b, act,
                        out_dtype=out_dtype, compute_dtype=compute_dtype)

    # Pixel-shuffle the 4 phases back together.
    # TODO(synk): fold this into the GEMM out_spec ((N,H,2,W,2,C) planes).
    out = out.reshape(2, 2, N, H, W, Cout).transpose(2, 3, 0, 4, 1, 5)
    return out.reshape(N, 2 * H, 2 * W, Cout)


# ----------------------------------------------------------------------------
# CompNet forward (Pallas) and a pure-lax float32 reference.
# ----------------------------------------------------------------------------
def compnet_forward_pallas(params, body_image, warped_cloth, segmentation_mask,
                           compute_dtype=jnp.bfloat16):
    # Concatenate the thin-channel inputs in NCHW, then do ONE NCHW->NHWC
    # transpose of the 7-channel tensor and cast to the compute dtype BEFORE
    # im2col (halves the largest materialized intermediate).
    x = jnp.concatenate([body_image, warped_cloth, segmentation_mask], axis=1)
    x = jnp.transpose(x, (0, 2, 3, 1)).astype(compute_dtype)    # (N, H, W, 7)

    x = conv2d_nhwc(x, params["w1"], params["b1"], 2, 1, "relu", compute_dtype)
    x = conv2d_nhwc(x, params["w2"], params["b2"], 2, 1, "relu", compute_dtype)
    x = conv_transpose2d_nhwc(x, params["w3"], params["b3"], "relu", compute_dtype)
    x = conv_transpose2d_nhwc(x, params["w4"], params["b4"], "tanh", compute_dtype,
                              out_dtype=jnp.float32)
    return jnp.transpose(x, (0, 3, 1, 2))                        # back to NCHW


def compnet_forward_reference(params, body_image, warped_cloth, segmentation_mask):
    dn = ("NCHW", "OIHW", "NCHW")
    prec = lax.Precision.HIGHEST

    def conv(x, w, b, s, p):
        y = lax.conv_general_dilated(x, w, (s, s), [(p, p), (p, p)],
                                     dimension_numbers=dn, precision=prec)
        return y + b[None, :, None, None]

    def convT(x, w_t, b, s, p):
        k = w_t.shape[2]
        w_eq = jnp.flip(w_t, axis=(2, 3)).transpose(1, 0, 2, 3)
        y = lax.conv_general_dilated(
            x, w_eq, (1, 1), [(k - 1 - p,) * 2, (k - 1 - p,) * 2],
            lhs_dilation=(s, s), dimension_numbers=dn, precision=prec)
        return y + b[None, :, None, None]

    x = jnp.concatenate([body_image, warped_cloth, segmentation_mask], axis=1)
    x = jax.nn.relu(conv(x, params["w1"], params["b1"], 2, 1))
    x = jax.nn.relu(conv(x, params["w2"], params["b2"], 2, 1))
    x = jax.nn.relu(convT(x, params["w3"], params["b3"], 2, 1))
    x = jnp.tanh(convT(x, params["w4"], params["b4"], 2, 1))
    return x


def init_params(key):
    ks = jax.random.split(key, 8)
    scale = 0.05
    return {
        # Conv2d(7, 64, 4, 2, 1)
        "w1": scale * jax.random.normal(ks[0], (64, 7, 4, 4), jnp.float32),
        "b1": scale * jax.random.normal(ks[1], (64,), jnp.float32),
        # Conv2d(64, 128, 4, 2, 1)
        "w2": scale * jax.random.normal(ks[2], (128, 64, 4, 4), jnp.float32),
        "b2": scale * jax.random.normal(ks[3], (128,), jnp.float32),
        # ConvTranspose2d(128, 64, 4, 2, 1) -> weight shape (in, out, k, k)
        "w3": scale * jax.random.normal(ks[4], (128, 64, 4, 4), jnp.float32),
        "b3": scale * jax.random.normal(ks[5], (64,), jnp.float32),
        # ConvTranspose2d(64, 3, 4, 2, 1)
        "w4": scale * jax.random.normal(ks[6], (64, 3, 4, 4), jnp.float32),
        "b4": scale * jax.random.normal(ks[7], (3,), jnp.float32),
    }


if __name__ == "__main__":
    key = jax.random.PRNGKey(0)
    kp, k1, k2, k3 = jax.random.split(key, 4)
    params = init_params(kp)

    B, H, W = 2, 16, 16
    body_image = jax.random.normal(k1, (B, 3, H, W), jnp.float32)
    warped_cloth = jax.random.normal(k2, (B, 3, H, W), jnp.float32)
    segmentation_mask = jax.random.uniform(k3, (B, 1, H, W), jnp.float32)

    ref = compnet_forward_reference(params, body_image, warped_cloth,
                                    segmentation_mask)
    ref = jax.block_until_ready(ref)

    # 1) Tight-tolerance validation at f32 (so bf16 rounding can't mask an
    #    indexing bug, per the correctness review).
    fwd_f32 = jax.jit(functools.partial(compnet_forward_pallas,
                                        compute_dtype=jnp.float32))
    out_f32 = jax.block_until_ready(
        fwd_f32(params, body_image, warped_cloth, segmentation_mask))
    assert out_f32.shape == (B, 3, H, W), out_f32.shape
    diff_f32 = float(jnp.max(jnp.abs(out_f32 - ref)))
    assert diff_f32 < 3e-2, f"f32 mismatch vs reference: {diff_f32}"

    # 2) Production path: bf16 MXU inputs, f32 epilogue.
    fwd_bf16 = jax.jit(functools.partial(compnet_forward_pallas,
                                         compute_dtype=jnp.bfloat16))
    out_bf16 = jax.block_until_ready(
        fwd_bf16(params, body_image, warped_cloth, segmentation_mask))
    assert out_bf16.shape == (B, 3, H, W), out_bf16.shape
    diff_bf16 = float(jnp.max(jnp.abs(out_bf16 - ref)))
    assert diff_bf16 < 1e-1, f"bf16 mismatch vs reference: {diff_bf16}"

    print("KERNEL_OK")
</pallas_src>

<mosaic_0001>
module attributes {stable_mosaic.version = 11 : i64} {
  func.func @_gemm_bias_act_kernel(%arg0: i32, %arg1: i32, %arg2: memref<1x64x128xf32, #tpu.memory_space<vmem>>, %arg3: memref<1x128x128xf32, #tpu.memory_space<vmem>>, %arg4: memref<1x128xf32, #tpu.memory_space<vmem>>, %arg5: memref<1x64x64xf32, #tpu.memory_space<vmem>>) attributes {dimension_semantics = [#tpu.dimension_semantics<parallel>, #tpu.dimension_semantics<parallel>], iteration_bounds = array<i64: 1, 2>, scalar_prefetch = 0 : i64, scratch_operands = 0 : i64, tpu.core_type = #tpu.core_type<tc>, window_params = [{transform_indices = @transform_0, window_bounds = array<i64: 1, 64, 128>}, {transform_indices = @transform_1, window_bounds = array<i64: 1, 128, 128>}, {pipeline_mode = #tpu.pipeline_mode<synchronous>, transform_indices = @transform_2, window_bounds = array<i64: 1, 128>}, {transform_indices = @transform_3, window_bounds = array<i64: 1, 64, 64>}]} {
    %c0 = arith.constant 0 : index
    %c0_0 = arith.constant 0 : index
    %c0_1 = arith.constant 0 : index
    %0 = vector.load %arg2[%c0, %c0_0, %c0_1] : memref<1x64x128xf32, #tpu.memory_space<vmem>>, vector<1x64x128xf32>
    %1 = vector.shape_cast %0 : vector<1x64x128xf32> to vector<64x128xf32>
    %c0_2 = arith.constant 0 : index
    %c0_3 = arith.constant 0 : index
    %c0_4 = arith.constant 0 : index
    %2 = vector.load %arg3[%c0_2, %c0_3, %c0_4] : memref<1x128x128xf32, #tpu.memory_space<vmem>>, vector<1x128x128xf32>
    %3 = vector.shape_cast %2 : vector<1x128x128xf32> to vector<128x128xf32>
    %cst = arith.constant dense<0.000000e+00> : vector<64x128xf32>
    %4 = tpu.matmul %1, %3, %cst {dimension_numbers = #tpu.dot_dimension_numbers<[1], [0], [0], [1], [0, 0, 1, 1], [], []>} : vector<64x128xf32>, vector<128x128xf32>, vector<64x128xf32> -> vector<64x128xf32>
    %c0_5 = arith.constant 0 : index
    %c0_6 = arith.constant 0 : index
    %5 = vector.load %arg4[%c0_5, %c0_6] : memref<1x128xf32, #tpu.memory_space<vmem>>, vector<1x128xf32>
    %6 = vector.broadcast %5 : vector<1x128xf32> to vector<64x128xf32>
    %7 = arith.addf %4, %6 : vector<64x128xf32>
    %cst_7 = arith.constant 0.000000e+00 : f32
    %8 = vector.broadcast %cst_7 : f32 to vector<64x128xf32>
    %9 = arith.maximumf %7, %8 : vector<64x128xf32>
    %10 = vector.extract_strided_slice %9 {offsets = [0, 0], sizes = [64, 64], strides = [1, 1]} : vector<64x128xf32> to vector<64x64xf32>
    %c0_8 = arith.constant 0 : index
    %c0_9 = arith.constant 0 : index
    %c0_10 = arith.constant 0 : index
    %11 = vector.load %arg5[%c0_8, %c0_9, %c0_10] : memref<1x64x64xf32, #tpu.memory_space<vmem>>, vector<1x64x64xf32>
    %12 = vector.shape_cast %11 : vector<1x64x64xf32> to vector<64x64xf32>
    %13 = vector.shape_cast %10 : vector<64x64xf32> to vector<1x64x64xf32>
    tpu.vector_store %arg5[%c0_8, %c0_9, %c0_10], %13 {strides = array<i32>} : memref<1x64x64xf32, #tpu.memory_space<vmem>>, vector<1x64x64xf32>,
    return
  }
  func.func @transform_0(%arg0: i32, %arg1: i32) -> (i32, i32, i32) {
    %c0_i32 = arith.constant 0 : i32
    %c0_i32_0 = arith.constant 0 : i32
    return %arg0, %arg1, %c0_i32 : i32, i32, i32
  }
  func.func @transform_1(%arg0: i32, %arg1: i32) -> (i32, i32, i32) {
    %c0_i32 = arith.constant 0 : i32
    %c0_i32_0 = arith.constant 0 : i32
    %c0_i32_1 = arith.constant 0 : i32
    return %arg0, %c0_i32, %c0_i32_0 : i32, i32, i32
  }
  func.func @transform_2(%arg0: i32, %arg1: i32) -> (i32, i32) {
    %c0_i32 = arith.constant 0 : i32
    %c0_i32_0 = arith.constant 0 : i32
    %c0_i32_1 = arith.constant 0 : i32
    return %c0_i32, %c0_i32_0 : i32, i32
  }
  func.func @transform_3(%arg0: i32, %arg1: i32) -> (i32, i32, i32) {
    %c0_i32 = arith.constant 0 : i32
    %c0_i32_0 = arith.constant 0 : i32
    return %arg0, %arg1, %c0_i32 : i32, i32, i32
  }
}

module attributes {stable_mosaic.version = 11 : i64} {
  func.func @_gemm_bias_act_kernel(%arg0: i32, %arg1: i32, %arg2: memref<1x16x1024xf32, #tpu.memory_space<vmem>>, %arg3: memref<1x1024x128xf32, #tpu.memory_space<vmem>>, %arg4: memref<1x128xf32, #tpu.memory_space<vmem>>, %arg5: memref<1x16x128xf32, #tpu.memory_space<vmem>>) attributes {dimension_semantics = [#tpu.dimension_semantics<parallel>, #tpu.dimension_semantics<parallel>], iteration_bounds = array<i64: 1, 2>, scalar_prefetch = 0 : i64, scratch_operands = 0 : i64, tpu.core_type = #tpu.core_type<tc>, window_params = [{transform_indices = @transform_0, window_bounds = array<i64: 1, 16, 1024>}, {transform_indices = @transform_1, window_bounds = array<i64: 1, 1024, 128>}, {pipeline_mode = #tpu.pipeline_mode<synchronous>, transform_indices = @transform_2, window_bounds = array<i64: 1, 128>}, {transform_indices = @transform_3, window_bounds = array<i64: 1, 16, 128>}]} {
    %c0 = arith.constant 0 : index
    %c0_0 = arith.constant 0 : index
    %c0_1 = arith.constant 0 : index
    %0 = vector.load %arg2[%c0, %c0_0, %c0_1] : memref<1x16x1024xf32, #tpu.memory_space<vmem>>, vector<1x16x1024xf32>
    %1 = vector.shape_cast %0 : vector<1x16x1024xf32> to vector<16x1024xf32>
    %c0_2 = arith.constant 0 : index
    %c0_3 = arith.constant 0 : index
    %c0_4 = arith.constant 0 : index
    %2 = vector.load %arg3[%c0_2, %c0_3, %c0_4] : memref<1x1024x128xf32, #tpu.memory_space<vmem>>, vector<1x1024x128xf32>
    %3 = vector.shape_cast %2 : vector<1x1024x128xf32> to vector<1024x128xf32>
    %cst = arith.constant dense<0.000000e+00> : vector<16x128xf32>
    %4 = tpu.matmul %1, %3, %cst {dimension_numbers = #tpu.dot_dimension_numbers<[1], [0], [0], [1], [0, 0, 1, 1], [], []>} : vector<16x1024xf32>, vector<1024x128xf32>, vector<16x128xf32> -> vector<16x128xf32>
    %c0_5 = arith.constant 0 : index
    %c0_6 = arith.constant 0 : index
    %5 = vector.load %arg4[%c0_5, %c0_6] : memref<1x128xf32, #tpu.memory_space<vmem>>, vector<1x128xf32>
    %6 = vector.broadcast %5 : vector<1x128xf32> to vector<16x128xf32>
    %7 = arith.addf %4, %6 : vector<16x128xf32>
    %cst_7 = arith.constant 0.000000e+00 : f32
    %8 = vector.broadcast %cst_7 : f32 to vector<16x128xf32>
    %9 = arith.maximumf %7, %8 : vector<16x128xf32>
    %c0_8 = arith.constant 0 : index
    %c0_9 = arith.constant 0 : index
    %c0_10 = arith.constant 0 : index
    %10 = vector.load %arg5[%c0_8, %c0_9, %c0_10] : memref<1x16x128xf32, #tpu.memory_space<vmem>>, vector<1x16x128xf32>
    %11 = vector.shape_cast %10 : vector<1x16x128xf32> to vector<16x128xf32>
    %12 = vector.shape_cast %9 : vector<16x128xf32> to vector<1x16x128xf32>
    tpu.vector_store %arg5[%c0_8, %c0_9, %c0_10], %12 {strides = array<i32>} : memref<1x16x128xf32, #tpu.memory_space<vmem>>, vector<1x16x128xf32>,
    return
  }
  func.func @transform_0(%arg0: i32, %arg1: i32) -> (i32, i32, i32) {
    %c0_i32 = arith.constant 0 : i32
    %c0_i32_0 = arith.constant 0 : i32
    return %arg0, %arg1, %c0_i32 : i32, i32, i32
  }
  func.func @transform_1(%arg0: i32, %arg1: i32) -> (i32, i32, i32) {
    %c0_i32 = arith.constant 0 : i32
    %c0_i32_0 = arith.constant 0 : i32
    %c0_i32_1 = arith.constant 0 : i32
    return %arg0, %c0_i32, %c0_i32_0 : i32, i32, i32
  }
  func.func @transform_2(%arg0: i32, %arg1: i32) -> (i32, i32) {
    %c0_i32 = arith.constant 0 : i32
    %c0_i32_0 = arith.constant 0 : i32
    %c0_i32_1 = arith.constant 0 : i32
    return %c0_i32, %c0_i32_0 : i32, i32
  }
  func.func @transform_3(%arg0: i32, %arg1: i32) -> (i32, i32, i32) {
    %c0_i32 = arith.constant 0 : i32
    %c0_i32_0 = arith.constant 0 : i32
    return %arg0, %arg1, %c0_i32 : i32, i32, i32
  }
}

module attributes {stable_mosaic.version = 11 : i64} {
  func.func @_gemm_bias_act_kernel(%arg0: i32, %arg1: i32, %arg2: memref<1x32x512xf32, #tpu.memory_space<vmem>>, %arg3: memref<1x512x128xf32, #tpu.memory_space<vmem>>, %arg4: memref<1x128xf32, #tpu.memory_space<vmem>>, %arg5: memref<1x32x64xf32, #tpu.memory_space<vmem>>) attributes {dimension_semantics = [#tpu.dimension_semantics<parallel>, #tpu.dimension_semantics<parallel>], iteration_bounds = array<i64: 4, 1>, scalar_prefetch = 0 : i64, scratch_operands = 0 : i64, tpu.core_type = #tpu.core_type<tc>, window_params = [{transform_indices = @transform_0, window_bounds = array<i64: 1, 32, 512>}, {transform_indices = @transform_1, window_bounds = array<i64: 1, 512, 128>}, {pipeline_mode = #tpu.pipeline_mode<synchronous>, transform_indices = @transform_2, window_bounds = array<i64: 1, 128>}, {transform_indices = @transform_3, window_bounds = array<i64: 1, 32, 64>}]} {
    %c0 = arith.constant 0 : index
    %c0_0 = arith.constant 0 : index
    %c0_1 = arith.constant 0 : index
    %0 = vector.load %arg2[%c0, %c0_0, %c0_1] : memref<1x32x512xf32, #tpu.memory_space<vmem>>, vector<1x32x512xf32>
    %1 = vector.shape_cast %0 : vector<1x32x512xf32> to vector<32x512xf32>
    %c0_2 = arith.constant 0 : index
    %c0_3 = arith.constant 0 : index
    %c0_4 = arith.constant 0 : index
    %2 = vector.load %arg3[%c0_2, %c0_3, %c0_4] : memref<1x512x128xf32, #tpu.memory_space<vmem>>, vector<1x512x128xf32>
    %3 = vector.shape_cast %2 : vector<1x512x128xf32> to vector<512x128xf32>
    %cst = arith.constant dense<0.000000e+00> : vector<32x128xf32>
    %4 = tpu.matmul %1, %3, %cst {dimension_numbers = #tpu.dot_dimension_numbers<[1], [0], [0], [1], [0, 0, 1, 1], [], []>} : vector<32x512xf32>, vector<512x128xf32>, vector<32x128xf32> -> vector<32x128xf32>
    %c0_5 = arith.constant 0 : index
    %c0_6 = arith.constant 0 : index
    %5 = vector.load %arg4[%c0_5, %c0_6] : memref<1x128xf32, #tpu.memory_space<vmem>>, vector<1x128xf32>
    %6 = vector.broadcast %5 : vector<1x128xf32> to vector<32x128xf32>
    %7 = arith.addf %4, %6 : vector<32x128xf32>
    %cst_7 = arith.constant 0.000000e+00 : f32
    %8 = vector.broadcast %cst_7 : f32 to vector<32x128xf32>
    %9 = arith.maximumf %7, %8 : vector<32x128xf32>
    %10 = vector.extract_strided_slice %9 {offsets = [0, 0], sizes = [32, 64], strides = [1, 1]} : vector<32x128xf32> to vector<32x64xf32>
    %c0_8 = arith.constant 0 : index
    %c0_9 = arith.constant 0 : index
    %c0_10 = arith.constant 0 : index
    %11 = vector.load %arg5[%c0_8, %c0_9, %c0_10] : memref<1x32x64xf32, #tpu.memory_space<vmem>>, vector<1x32x64xf32>
    %12 = vector.shape_cast %11 : vector<1x32x64xf32> to vector<32x64xf32>
    %13 = vector.shape_cast %10 : vector<32x64xf32> to vector<1x32x64xf32>
    tpu.vector_store %arg5[%c0_8, %c0_9, %c0_10], %13 {strides = array<i32>} : memref<1x32x64xf32, #tpu.memory_space<vmem>>, vector<1x32x64xf32>,
    return
  }
  func.func @transform_0(%arg0: i32, %arg1: i32) -> (i32, i32, i32) {
    %c0_i32 = arith.constant 0 : i32
    %c0_i32_0 = arith.constant 0 : i32
    return %arg0, %arg1, %c0_i32 : i32, i32, i32
  }
  func.func @transform_1(%arg0: i32, %arg1: i32) -> (i32, i32, i32) {
    %c0_i32 = arith.constant 0 : i32
    %c0_i32_0 = arith.constant 0 : i32
    %c0_i32_1 = arith.constant 0 : i32
    return %arg0, %c0_i32, %c0_i32_0 : i32, i32, i32
  }
  func.func @transform_2(%arg0: i32, %arg1: i32) -> (i32, i32) {
    %c0_i32 = arith.constant 0 : i32
    %c0_i32_0 = arith.constant 0 : i32
    %c0_i32_1 = arith.constant 0 : i32
    return %c0_i32, %c0_i32_0 : i32, i32
  }
  func.func @transform_3(%arg0: i32, %arg1: i32) -> (i32, i32, i32) {
    %c0_i32 = arith.constant 0 : i32
    %c0_i32_0 = arith.constant 0 : i32
    return %arg0, %arg1, %c0_i32 : i32, i32, i32
  }
}

module attributes {stable_mosaic.version = 11 : i64} {
  func.func @_gemm_bias_act_kernel(%arg0: i32, %arg1: i32, %arg2: memref<1x128x256xf32, #tpu.memory_space<vmem>>, %arg3: memref<1x256x128xf32, #tpu.memory_space<vmem>>, %arg4: memref<1x128xf32, #tpu.memory_space<vmem>>, %arg5: memref<1x128x3xf32, #tpu.memory_space<vmem>>) attributes {dimension_semantics = [#tpu.dimension_semantics<parallel>, #tpu.dimension_semantics<parallel>], iteration_bounds = array<i64: 4, 1>, scalar_prefetch = 0 : i64, scratch_operands = 0 : i64, tpu.core_type = #tpu.core_type<tc>, window_params = [{transform_indices = @transform_0, window_bounds = array<i64: 1, 128, 256>}, {transform_indices = @transform_1, window_bounds = array<i64: 1, 256, 128>}, {pipeline_mode = #tpu.pipeline_mode<synchronous>, transform_indices = @transform_2, window_bounds = array<i64: 1, 128>}, {transform_indices = @transform_3, window_bounds = array<i64: 1, 128, 3>}]} {
    %c0 = arith.constant 0 : index
    %c0_0 = arith.constant 0 : index
    %c0_1 = arith.constant 0 : index
    %0 = vector.load %arg2[%c0, %c0_0, %c0_1] : memref<1x128x256xf32, #tpu.memory_space<vmem>>, vector<1x128x256xf32>
    %1 = vector.shape_cast %0 : vector<1x128x256xf32> to vector<128x256xf32>
    %c0_2 = arith.constant 0 : index
    %c0_3 = arith.constant 0 : index
    %c0_4 = arith.constant 0 : index
    %2 = vector.load %arg3[%c0_2, %c0_3, %c0_4] : memref<1x256x128xf32, #tpu.memory_space<vmem>>, vector<1x256x128xf32>
    %3 = vector.shape_cast %2 : vector<1x256x128xf32> to vector<256x128xf32>
    %cst = arith.constant dense<0.000000e+00> : vector<128x128xf32>
    %4 = tpu.matmul %1, %3, %cst {dimension_numbers = #tpu.dot_dimension_numbers<[1], [0], [0], [1], [0, 0, 1, 1], [], []>} : vector<128x256xf32>, vector<256x128xf32>, vector<128x128xf32> -> vector<128x128xf32>
    %c0_5 = arith.constant 0 : index
    %c0_6 = arith.constant 0 : index
    %5 = vector.load %arg4[%c0_5, %c0_6] : memref<1x128xf32, #tpu.memory_space<vmem>>, vector<1x128xf32>
    %6 = vector.broadcast %5 : vector<1x128xf32> to vector<128x128xf32>
    %7 = arith.addf %4, %6 : vector<128x128xf32>
    %8 = math.tanh %7 : vector<128x128xf32>
    %9 = vector.extract_strided_slice %8 {offsets = [0, 0], sizes = [128, 3], strides = [1, 1]} : vector<128x128xf32> to vector<128x3xf32>
    %c0_7 = arith.constant 0 : index
    %c0_8 = arith.constant 0 : index
    %c0_9 = arith.constant 0 : index
    %10 = vector.load %arg5[%c0_7, %c0_8, %c0_9] : memref<1x128x3xf32, #tpu.memory_space<vmem>>, vector<1x128x3xf32>
    %11 = vector.shape_cast %10 : vector<1x128x3xf32> to vector<128x3xf32>
    %12 = vector.shape_cast %9 : vector<128x3xf32> to vector<1x128x3xf32>
    tpu.vector_store %arg5[%c0_7, %c0_8, %c0_9], %12 {strides = array<i32>} : memref<1x128x3xf32, #tpu.memory_space<vmem>>, vector<1x128x3xf32>,
    return
  }
  func.func @transform_0(%arg0: i32, %arg1: i32) -> (i32, i32, i32) {
    %c0_i32 = arith.constant 0 : i32
    %c0_i32_0 = arith.constant 0 : i32
    return %arg0, %arg1, %c0_i32 : i32, i32, i32
  }
  func.func @transform_1(%arg0: i32, %arg1: i32) -> (i32, i32, i32) {
    %c0_i32 = arith.constant 0 : i32
    %c0_i32_0 = arith.constant 0 : i32
    %c0_i32_1 = arith.constant 0 : i32
    return %arg0, %c0_i32, %c0_i32_0 : i32, i32, i32
  }
  func.func @transform_2(%arg0: i32, %arg1: i32) -> (i32, i32) {
    %c0_i32 = arith.constant 0 : i32
    %c0_i32_0 = arith.constant 0 : i32
    %c0_i32_1 = arith.constant 0 : i32
    return %c0_i32, %c0_i32_0 : i32, i32
  }
  func.func @transform_3(%arg0: i32, %arg1: i32) -> (i32, i32, i32) {
    %c0_i32 = arith.constant 0 : i32
    %c0_i32_0 = arith.constant 0 : i32
    return %arg0, %arg1, %c0_i32 : i32, i32, i32
  }
}

</mosaic_0001>

<llo_original>
// kernel: compnet_forward_pallas.4
$region0: #{compnet_forward_pallas.4}
  #allocation0 [shape = 'u32[]', space=smem, size = 0x4, offset = 0x4, fixed_abs, tag = 'smem constant byte address 0x4 - core index']
  #allocation1 [shape = 'u32[72,128]{1,0:T(1,128)}', space=vmem, size = 0x9000, scoped, tag = 'internal scratch']
  %s0 = inlined_call_operand.vmem [shape: f32[1,128,128], index: 0, kind: input, shape index: {}]
  %s1 = inlined_call_operand.vmem [shape: f32[1,128,128], index: 1, kind: input, shape index: {}]
  %s2 = inlined_call_operand.vmem [shape: f32[1,128], index: 2, kind: input, shape index: {}]
  %s3 = inlined_call_operand.vmem [shape: f32[1,128,64], index: 3, kind: output, shape index: {}]
  %s4 = sld [smem:[#allocation0]]
  $region45: #{compnet_forward_pallas.4} parent=0
    _
  %s6 = ssub.s32 1, %s4
  %s7 = scalar_select 0, %s6, %s4
  loop: start=0, step=1, limit=4
  $region2: #{compnet_forward_pallas.4} parent=0 // loop_pre_header
    _
  $region3: #{compnet_forward_pallas.4} parent=0 // loop_header
    %s9 = sphi 0, %s13
    %p10 = scmp.ge.s32.totalorder %s9, 4
    %s16 = sphi 0, %s28
    %s17 = sphi 0, %s24
    %s18 = sphi 0, %s16
    %s19 = sphi 0, %s17
    %s20 = sphi 0, %s18
    %s21 = sphi 0, %s19
    %s33 = sphi 0, %s35
    %s36 = sphi 0, %s33
    %s37 = sphi 0, %s36
    %s53 = sphi 0, %s37
    %s59 = sphi 0, %s61
    %s62 = sphi 0, %s59
    %s63 = sphi 0, %s62
    %s79 = sphi 0, %s63
    %s83 = sphi 0, %s83
    %s85 = sphi 0, %s83
    %s86 = sphi 0, %s85
    %s100 = sphi 0, %s86
    %s108 = sphi 0, %s110
    %s111 = sphi 0, %s108
    %s112 = sphi 0, %s111
    %s128 = sphi 0, %s112
  $region4: #{compnet_forward_pallas.4} parent=0 // loop_header_branch
    %12 = sbr.rel (%p10) target = $region8
  $region5: #{compnet_forward_pallas.4} parent=0 // loop_body
    %s14 = ssub.s32 %s9, 1
    %s15 = ssub.s32 %s9, 2
    %s22 = sadd.s32 1, %s17
    %p23 = scmp.ge.s32.totalorder %s22, 2
    %s24 = scalar_select %p23, 0, %s22
    %s25 = sadd.s32 1, %s16
    %s26 = scalar_select %p23, %s25, %s16
    %p27 = scmp.ge.s32.totalorder %s26, 1
    %s28 = scalar_select %p27, 0, %s26
    %s29 = ssub.s32 %s16, %s28
    %s30 = ssub.s32 %s17, %s24
    %s31 = sor.u32 %s29, %s30
    %p32 = scmp.eq.s32.totalorder %s31, 0
    %s34 = sadd.s32 %s33, 1
    %s35 = scalar_select %p32, %s33, %s34
    %p38 = pneg %p32
    %p39 = scmp.eq.s32.totalorder %s9, 1
    %p40 = por %p38, %p39
    %p41 = scmp.ne.s32.totalorder %s33, %s36
    %p42 = scmp.eq.s32.totalorder %s9, 0
    %p43 = por %p41, %p42
    %p44 = scmp.ne.s32.totalorder %s33, %s36
    %p45 = scmp.eq.s32.totalorder %s14, 1
    %p46 = por %p44, %p45
    %p47 = scmp.ne.s32.totalorder %s36, %s37
    %p48 = scmp.eq.s32.totalorder %s14, 0
    %p49 = por %p47, %p48
    %p50 = scmp.ne.s32.totalorder %s36, %s37
    %p51 = scmp.eq.s32.totalorder %s15, 1
    %p52 = por %p50, %p51
    %p54 = scmp.ne.s32.totalorder %s37, %s53
    %p55 = scmp.eq.s32.totalorder %s15, 0
    %p56 = por %p54, %p55
    %s57 = ssub.s32 %s16, %s28
    %p58 = scmp.eq.s32.totalorder %s57, 0
    %s60 = sadd.s32 %s59, 1
    %s61 = scalar_select %p58, %s59, %s60
    %p64 = pneg %p58
    %p65 = scmp.eq.s32.totalorder %s9, 1
    %p66 = por %p64, %p65
    %p67 = scmp.ne.s32.totalorder %s59, %s62
    %p68 = scmp.eq.s32.totalorder %s9, 0
    %p69 = por %p67, %p68
    %p70 = scmp.ne.s32.totalorder %s59, %s62
    %p71 = scmp.eq.s32.totalorder %s14, 1
    %p72 = por %p70, %p71
    %p73 = scmp.ne.s32.totalorder %s62, %s63
    %p74 = scmp.eq.s32.totalorder %s14, 0
    %p75 = por %p73, %p74
    %p76 = scmp.ne.s32.totalorder %s62, %s63
    %p77 = scmp.eq.s32.totalorder %s15, 1
    %p78 = por %p76, %p77
    %p80 = scmp.ne.s32.totalorder %s63, %s79
    %p81 = scmp.eq.s32.totalorder %s15, 0
    %p82 = por %p80, %p81
    %s84 = sadd.s32 %s83, 1
    %p87 = scmp.eq.s32.totalorder %s9, 1
    %p88 = scmp.ne.s32.totalorder %s83, %s85
    %p89 = scmp.eq.s32.totalorder %s9, 0
    %p90 = por %p88, %p89
    %p91 = scmp.ne.s32.totalorder %s83, %s85
    %p92 = scmp.eq.s32.totalorder %s14, 1
    %p93 = por %p91, %p92
    %p94 = scmp.ne.s32.totalorder %s85, %s86
    %p95 = scmp.eq.s32.totalorder %s14, 0
    %p96 = por %p94, %p95
    %p97 = scmp.ne.s32.totalorder %s85, %s86
    %p98 = scmp.eq.s32.totalorder %s15, 1
    %p99 = por %p97, %p98
    %p101 = scmp.ne.s32.totalorder %s86, %s100
    %p102 = scmp.eq.s32.totalorder %s15, 0
    %p103 = por %p101, %p102
    %s104 = ssub.s32 %s16, %s28
    %s105 = ssub.s32 %s17, %s24
    %s106 = sor.u32 %s104, %s105
    %p107 = scmp.eq.s32.totalorder %s106, 0
    %s109 = sadd.s32 %s108, 1
    %s110 = scalar_select %p107, %s108, %s109
    %p113 = pneg %p107
    %p114 = scmp.eq.s32.totalorder %s9, 1
    %p115 = por %p113, %p114
    %p116 = scmp.ne.s32.totalorder %s108, %s111
    %p117 = scmp.eq.s32.totalorder %s9, 0
    %p118 = por %p116, %p117
    %p119 = scmp.ne.s32.totalorder %s108, %s111
    %p120 = scmp.eq.s32.totalorder %s14, 1
    %p121 = por %p119, %p120
    %p122 = scmp.ne.s32.totalorder %s111, %s112
    %p123 = scmp.eq.s32.totalorder %s14, 0
    %p124 = por %p122, %p123
    %p125 = scmp.ne.s32.totalorder %s111, %s112
    %p126 = scmp.eq.s32.totalorder %s15, 1
    %p127 = por %p125, %p126
    %p129 = scmp.ne.s32.totalorder %s112, %s128
    %p130 = scmp.eq.s32.totalorder %s15, 0
    %p131 = por %p129, %p130
    %p132 = scmp.le.s32.totalorder 1, %s9
    %p133 = scmp.lt.s32.totalorder %s9, 3
    %p134 = pnand %p132, %p133
    %p135 = pneg %p134
    // Predicated region
    $region9: #{compnet_forward_pallas.4} parent=5 // pred_check
      _
    $region10: #{compnet_forward_pallas.4} parent=5 // pred_check_branch
      %137 = sbr.rel (%p134) target = $region12
    $region11: #{compnet_forward_pallas.4} parent=5 // pred_region
      %s138 = ssub.s32 %s9, 1
      // Predicated region
      $region13: #{compnet_forward_pallas.4} parent=11 // pred_check
        %p139 = pneg %p75
      $region14: #{compnet_forward_pallas.4} parent=11 // pred_check_branch
        %141 = sbr.rel (%p139) target = $region16
      $region15: #{compnet_forward_pallas.4} parent=11 // pred_region
        %p142 = scmp.lt.s32.totalorder %s18, 0
        %s143 = scalar_select %p142, %s18, 0
        %s144 = smul.addr %s143, 16
        %s145 = smul.addr %s144, 8
        %s146 = scalar_lea.vmem %s1, %s145
      $region16: #{compnet_forward_pallas.4} parent=11 // pred_fallthru
        _
      // Predicated region
      $region17: #{compnet_forward_pallas.4} parent=11 // pred_check
        %p147 = pneg %p96
      $region18: #{compnet_forward_pallas.4} parent=11 // pred_check_branch
        %149 = sbr.rel (%p147) target = $region20
      $region19: #{compnet_forward_pallas.4} parent=11 // pred_region
        _
      $region20: #{compnet_forward_pallas.4} parent=11 // pred_fallthru
        _
    $region12: #{compnet_forward_pallas.4} parent=5 // pred_fallthru
      _
    %p150 = scmp.lt.s32.totalorder %s9, 2
    // Predicated region
    $region21: #{compnet_forward_pallas.4} parent=5 // pred_check
      %p151 = pneg %p150
    $region22: #{compnet_forward_pallas.4} parent=5 // pred_check_branch
      %153 = sbr.rel (%p151) target = $region24
    $region23: #{compnet_forward_pallas.4} parent=5 // pred_region
      // Predicated region
      $region25: #{compnet_forward_pallas.4} parent=23 // pred_check
        %p154 = pneg %p43
      $region26: #{compnet_forward_pallas.4} parent=23 // pred_check_branch
        %156 = sbr.rel (%p154) target = $region28
      $region27: #{compnet_forward_pallas.4} parent=23 // pred_region
        %s157 = smul.u32 8, %s17
        %p158 = scmp.lt.s32.totalorder %s16, 0
        %s159 = scalar_select %p158, %s16, 0
        %p160 = scmp.lt.s32.totalorder %s157, 15
        %s161 = scalar_select %p160, %s157, 15
        %s162 = smul.addr %s159, 16
        %s163 = sadd.s32 %s161, %s162
        %s164 = smul.addr %s163, 8
        %s165 = scalar_lea.vmem %s0, %s164
        %s166 = smul.u32 8, %s17
      $region28: #{compnet_forward_pallas.4} parent=23 // pred_fallthru
        _
    $region24: #{compnet_forward_pallas.4} parent=5 // pred_fallthru
      _
    %p167 = scmp.le.s32.totalorder 1, %s9
    %p168 = scmp.lt.s32.totalorder %s9, 3
    %p169 = pnand %p167, %p168
    %p170 = pneg %p169
    // Predicated region
    $region29: #{compnet_forward_pallas.4} parent=5 // pred_check
      _
    $region30: #{compnet_forward_pallas.4} parent=5 // pred_check_branch
      %172 = sbr.rel (%p169) target = $region32
    $region31: #{compnet_forward_pallas.4} parent=5 // pred_region
      %s173 = ssub.s32 %s9, 1
      %s174 = smul.u32 8, %s19
      %p175 = scmp.lt.s32.totalorder %s18, 0
      %s176 = scalar_select %p175, %s18, 0
      %p177 = scmp.lt.s32.totalorder %s174, 15
      %s178 = scalar_select %p177, %s174, 15
      %s179 = smul.addr %s176, 16
      %s180 = sadd.s32 %s178, %s179
      %s181 = smul.addr %s180, 8
      %s182 = scalar_lea.vmem %s0, %s181
      %p183 = pneg %p49
      %p184 = pneg %p46
      %p185 = scmp.lt.s32.totalorder %s18, 0
      %s186 = scalar_select %p185, %s18, 0
      %s187 = smul.addr %s186, 16
      %s188 = smul.addr %s187, 8
      %s189 = scalar_lea.vmem %s1, %s188
      %p190 = pneg %p75
      %p191 = pneg %p72
      %p192 = pneg %p96
      %p193 = pneg %p93
      %p194 = pneg %p124
      %p195 = pneg %p121
      %s196 = smul.u32 8, %s19
      %p197 = scmp.lt.s32.totalorder %s18, 0
      %s198 = scalar_select %p197, %s18, 0
      %p199 = scmp.lt.s32.totalorder %s196, 15
      %s200 = scalar_select %p199, %s196, 15
      %s201 = smul.addr %s198, 16
      %s202 = sadd.s32 %s200, %s201
      %s203 = smul.addr %s202, 8
      %s204 = scalar_lea.vmem %s3, %s203
      %s205 = smul.u32 8, %s19
      %p206 = scmp.lt.s32.totalorder %s18, 0
      %s207 = scalar_select %p206, %s18, 0
      %p208 = scmp.lt.s32.totalorder %s205, 15
      %s209 = scalar_select %p208, %s205, 15
      %s210 = smul.addr %s207, 16
      %s211 = sadd.s32 %s209, %s210
      %s212 = smul.addr %s211, 8
      %s213 = scalar_lea.vmem %s0, %s212
      %s214 = smul.u32 8, %s19
      %p215 = scmp.lt.s32.totalorder %s18, 0
      %s216 = scalar_select %p215, %s18, 0
      %s217 = smul.addr %s216, 16
      %s218 = smul.addr %s217, 8
      %s219 = scalar_lea.vmem %s1, %s218
      %s220 = smul.u32 8, %s19
      %p221 = scmp.lt.s32.totalorder %s18, 0
      %s222 = scalar_select %p221, %s18, 0
      %p223 = scmp.lt.s32.totalorder %s220, 15
      %s224 = scalar_select %p223, %s220, 15
      %s225 = smul.addr %s222, 16
      %s226 = sadd.s32 %s224, %s225
      %s227 = smul.addr %s226, 8
      %s228 = scalar_lea.vmem %s3, %s227
      %s229 = smul.u32 8, %s19
      %v230 = vld [vmem:[%s213] sm:$0xff]
      %v231 = vld [vmem:[%s213 + $0x8] sm:$0xff]
      %v232 = vld [vmem:[%s213 + $0x10] sm:$0xff]
      %v233 = vld [vmem:[%s213 + $0x18] sm:$0xff]
      %v234 = vld [vmem:[%s213 + $0x20] sm:$0xff]
      %v235 = vld [vmem:[%s213 + $0x28] sm:$0xff]
      %v236 = vld [vmem:[%s213 + $0x30] sm:$0xff]
      %v237 = vld [vmem:[%s213 + $0x38] sm:$0xff]
      %v238 = vld [vmem:[%s219] sm:$0xff]
      %v239 = vld [vmem:[%s219 + $0x8] sm:$0xff]
      %v240 = vld [vmem:[%s219 + $0x10] sm:$0xff]
      %v241 = vld [vmem:[%s219 + $0x18] sm:$0xff]
      %v242 = vld [vmem:[%s219 + $0x20] sm:$0xff]
      %v243 = vld [vmem:[%s219 + $0x28] sm:$0xff]
      %v244 = vld [vmem:[%s219 + $0x30] sm:$0xff]
      %v245 = vld [vmem:[%s219 + $0x38] sm:$0xff]
      %v246 = vld [vmem:[%s219 + $0x40] sm:$0xff]
      %v247 = vld [vmem:[%s219 + $0x48] sm:$0xff]
      %v248 = vld [vmem:[%s219 + $0x50] sm:$0xff]
      %v249 = vld [vmem:[%s219 + $0x58] sm:$0xff]
      %v250 = vld [vmem:[%s219 + $0x60] sm:$0xff]
      %v251 = vld [vmem:[%s219 + $0x68] sm:$0xff]
      %v252 = vld [vmem:[%s219 + $0x70] sm:$0xff]
      %v253 = vld [vmem:[%s219 + $0x78] sm:$0xff]
      %v254 = vld [vmem:[%s2] sm:$0x1]
      %v256 = vperm.slane %v254, 0
      %258 = vmatpush.msra.mxu0 %v253
      %259 = vmatpush.msra.mxu0 %v252
      %260 = vmatpush.msra.mxu0 %v251
      %261 = vmatpush.msra.mxu0 %v250
      %262 = vmatpush.msra.mxu0 %v249
      %263 = vmatpush.msra.mxu0 %v248
      %264 = vmatpush.msra.mxu0 %v247
      %265 = vmatpush.msra.mxu0 %v246
      %266 = vmatpush.msra.mxu0 %v245
      %267 = vmatpush.msra.mxu0 %v244
      %268 = vmatpush.msra.mxu0 %v243
      %269 = vmatpush.msra.mxu0 %v242
      %270 = vmatpush.msra.mxu0 %v241
      %271 = vmatpush.msra.mxu0 %v240
      %272 = vmatpush.msra.mxu0 %v239
      %273 = vmatpush.msra.mxu0 %v238
      %274 = vmatmul.f32.gmra.mxu0 %v230
      %v275 = vpop.f32.mrf.mxu0
      %v276 = vadd.f32 %v256, %v275
      %277 = vmatmul.f32.gmra.mxu0 %v231
      %v278 = vpop.f32.mrf.mxu0
      %v279 = vadd.f32 %v256, %v278
      %280 = vmatmul.f32.gmra.mxu0 %v232
      %v281 = vpop.f32.mrf.mxu0
      %v282 = vadd.f32 %v256, %v281
      %283 = vmatmul.f32.gmra.mxu0 %v233
      %v284 = vpop.f32.mrf.mxu0
      %v285 = vadd.f32 %v256, %v284
      %286 = vmatmul.f32.gmra.mxu0 %v234
      %v287 = vpop.f32.mrf.mxu0
      %v288 = vadd.f32 %v256, %v287
      %289 = vmatmul.f32.gmra.mxu0 %v235
      %v290 = vpop.f32.mrf.mxu0
      %v291 = vadd.f32 %v256, %v290
      %292 = vmatmul.f32.gmra.mxu0 %v236
      %v293 = vpop.f32.mrf.mxu0
      %v294 = vadd.f32 %v256, %v293
      %295 = vmatmul.f32.gmra.mxu0 %v237
      %v296 = vpop.f32.mrf.mxu0
      %v297 = vadd.f32 %v256, %v296
      %298 = vdwg.mxu0
      %v299 = vmax.f32 %v276, 0.0
      %v300 = vmax.f32 %v279, 0.0
      %v301 = vmax.f32 %v282, 0.0
      %v302 = vmax.f32 %v285, 0.0
      %v303 = vmax.f32 %v288, 0.0
      %v304 = vmax.f32 %v291, 0.0
      %v305 = vmax.f32 %v294, 0.0
      %v306 = vmax.f32 %v297, 0.0
      %vm307 = vcmask 523264
      %308 = vst.msk [vmem:[%s228] sm:$0xff] %vm307, %v299
      %309 = vst.msk [vmem:[%s228 + $0x8] sm:$0xff] %vm307, %v300
      %310 = vst.msk [vmem:[%s228 + $0x10] sm:$0xff] %vm307, %v301
      %311 = vst.msk [vmem:[%s228 + $0x18] sm:$0xff] %vm307, %v302
      %312 = vst.msk [vmem:[%s228 + $0x20] sm:$0xff] %vm307, %v303
      %313 = vst.msk [vmem:[%s228 + $0x28] sm:$0xff] %vm307, %v304
      %314 = vst.msk [vmem:[%s228 + $0x30] sm:$0xff] %vm307, %v305
      %315 = vst.msk [vmem:[%s228 + $0x38] sm:$0xff] %vm307, %v306
      %s316 = smul.u32 8, %s19
      %p317 = scmp.lt.s32.totalorder %s18, 0
      %s318 = scalar_select %p317, %s18, 0
      %p319 = scmp.lt.s32.totalorder %s316, 15
      %s320 = scalar_select %p319, %s316, 15
      %s321 = smul.addr %s318, 16
      %s322 = sadd.s32 %s320, %s321
      %s323 = smul.addr %s322, 8
      %s324 = scalar_lea.vmem %s3, %s323
      // Predicated region
      $region33: #{compnet_forward_pallas.4} parent=31 // pred_check
        %p325 = pneg %p121
      $region34: #{compnet_forward_pallas.4} parent=31 // pred_check_branch
        %327 = sbr.rel (%p325) target = $region36
      $region35: #{compnet_forward_pallas.4} parent=31 // pred_region
        %s328 = smul.u32 8, %s19
      $region36: #{compnet_forward_pallas.4} parent=31 // pred_fallthru
        _
    $region32: #{compnet_forward_pallas.4} parent=5 // pred_fallthru
      _
    %p329 = scmp.le.s32.totalorder 2, %s9
    // Predicated region
    $region37: #{compnet_forward_pallas.4} parent=5 // pred_check
      %p330 = pneg %p329
    $region38: #{compnet_forward_pallas.4} parent=5 // pred_check_branch
      %332 = sbr.rel (%p330) target = $region40
    $region39: #{compnet_forward_pallas.4} parent=5 // pred_region
      %s333 = ssub.s32 %s9, 2
      // Predicated region
      $region41: #{compnet_forward_pallas.4} parent=39 // pred_check
        %p334 = pneg %p127
      $region42: #{compnet_forward_pallas.4} parent=39 // pred_check_branch
        %336 = sbr.rel (%p334) target = $region44
      $region43: #{compnet_forward_pallas.4} parent=39 // pred_region
        %s337 = smul.u32 8, %s21
        %p338 = scmp.lt.s32.totalorder %s20, 0
        %s339 = scalar_select %p338, %s20, 0
        %p340 = scmp.lt.s32.totalorder %s337, 15
        %s341 = scalar_select %p340, %s337, 15
        %s342 = smul.addr %s339, 16
        %s343 = sadd.s32 %s341, %s342
        %s344 = smul.addr %s343, 8
        %s345 = scalar_lea.vmem %s3, %s344
      $region44: #{compnet_forward_pallas.4} parent=39 // pred_fallthru
        _
    $region40: #{compnet_forward_pallas.4} parent=5 // pred_fallthru
      _
  $region6: #{compnet_forward_pallas.4} parent=0 // loop_footer
    %s13 = sadd.s32 1, %s9
  $region7: #{compnet_forward_pallas.4} parent=0 // loop_footer_branch
    %8 = sbr.rel target = $region3
  $region8: #{compnet_forward_pallas.4} parent=0 // loop_exit
    _

// kernel: compnet_forward_pallas.5
$region0: #{compnet_forward_pallas.5}
  #allocation0 [shape = 'u32[]', space=smem, size = 0x4, offset = 0x4, fixed_abs, tag = 'smem constant byte address 0x4 - core index']
  #allocation1 [shape = 'u32[72,128]{1,0:T(1,128)}', space=vmem, size = 0x9000, scoped, tag = 'internal scratch']
  %s0 = inlined_call_operand.vmem [shape: f32[1,32,1024], index: 0, kind: input, shape index: {}]
  %s1 = inlined_call_operand.vmem [shape: f32[1,1024,128], index: 1, kind: input, shape index: {}]
  %s2 = inlined_call_operand.vmem [shape: f32[1,128], index: 2, kind: input, shape index: {}]
  %s3 = inlined_call_operand.vmem [shape: f32[1,32,128], index: 3, kind: output, shape index: {}]
  %s4 = sld [smem:[#allocation0]]
  $region45: #{compnet_forward_pallas.5} parent=0
    _
  %s6 = ssub.s32 1, %s4
  %s7 = scalar_select 0, %s6, %s4
  loop: start=0, step=1, limit=4
  $region2: #{compnet_forward_pallas.5} parent=0 // loop_pre_header
    _
  $region3: #{compnet_forward_pallas.5} parent=0 // loop_header
    %s9 = sphi 0, %s13
    %p10 = scmp.ge.s32.totalorder %s9, 4
    %s16 = sphi 0, %s28
    %s17 = sphi 0, %s24
    %s18 = sphi 0, %s16
    %s19 = sphi 0, %s17
    %s20 = sphi 0, %s18
    %s21 = sphi 0, %s19
    %s33 = sphi 0, %s35
    %s36 = sphi 0, %s33
    %s37 = sphi 0, %s36
    %s53 = sphi 0, %s37
    %s59 = sphi 0, %s61
    %s62 = sphi 0, %s59
    %s63 = sphi 0, %s62
    %s79 = sphi 0, %s63
    %s83 = sphi 0, %s83
    %s85 = sphi 0, %s83
    %s86 = sphi 0, %s85
    %s100 = sphi 0, %s86
    %s108 = sphi 0, %s110
    %s111 = sphi 0, %s108
    %s112 = sphi 0, %s111
    %s128 = sphi 0, %s112
  $region4: #{compnet_forward_pallas.5} parent=0 // loop_header_branch
    %12 = sbr.rel (%p10) target = $region8
  $region5: #{compnet_forward_pallas.5} parent=0 // loop_body
    %s14 = ssub.s32 %s9, 1
    %s15 = ssub.s32 %s9, 2
    %s22 = sadd.s32 1, %s17
    %p23 = scmp.ge.s32.totalorder %s22, 2
    %s24 = scalar_select %p23, 0, %s22
    %s25 = sadd.s32 1, %s16
    %s26 = scalar_select %p23, %s25, %s16
    %p27 = scmp.ge.s32.totalorder %s26, 1
    %s28 = scalar_select %p27, 0, %s26
    %s29 = ssub.s32 %s16, %s28
    %s30 = ssub.s32 %s17, %s24
    %s31 = sor.u32 %s29, %s30
    %p32 = scmp.eq.s32.totalorder %s31, 0
    %s34 = sadd.s32 %s33, 1
    %s35 = scalar_select %p32, %s33, %s34
    %p38 = pneg %p32
    %p39 = scmp.eq.s32.totalorder %s9, 1
    %p40 = por %p38, %p39
    %p41 = scmp.ne.s32.totalorder %s33, %s36
    %p42 = scmp.eq.s32.totalorder %s9, 0
    %p43 = por %p41, %p42
    %p44 = scmp.ne.s32.totalorder %s33, %s36
    %p45 = scmp.eq.s32.totalorder %s14, 1
    %p46 = por %p44, %p45
    %p47 = scmp.ne.s32.totalorder %s36, %s37
    %p48 = scmp.eq.s32.totalorder %s14, 0
    %p49 = por %p47, %p48
    %p50 = scmp.ne.s32.totalorder %s36, %s37
    %p51 = scmp.eq.s32.totalorder %s15, 1
    %p52 = por %p50, %p51
    %p54 = scmp.ne.s32.totalorder %s37, %s53
    %p55 = scmp.eq.s32.totalorder %s15, 0
    %p56 = por %p54, %p55
    %s57 = ssub.s32 %s16, %s28
    %p58 = scmp.eq.s32.totalorder %s57, 0
    %s60 = sadd.s32 %s59, 1
    %s61 = scalar_select %p58, %s59, %s60
    %p64 = pneg %p58
    %p65 = scmp.eq.s32.totalorder %s9, 1
    %p66 = por %p64, %p65
    %p67 = scmp.ne.s32.totalorder %s59, %s62
    %p68 = scmp.eq.s32.totalorder %s9, 0
    %p69 = por %p67, %p68
    %p70 = scmp.ne.s32.totalorder %s59, %s62
    %p71 = scmp.eq.s32.totalorder %s14, 1
    %p72 = por %p70, %p71
    %p73 = scmp.ne.s32.totalorder %s62, %s63
    %p74 = scmp.eq.s32.totalorder %s14, 0
    %p75 = por %p73, %p74
    %p76 = scmp.ne.s32.totalorder %s62, %s63
    %p77 = scmp.eq.s32.totalorder %s15, 1
    %p78 = por %p76, %p77
    %p80 = scmp.ne.s32.totalorder %s63, %s79
    %p81 = scmp.eq.s32.totalorder %s15, 0
    %p82 = por %p80, %p81
    %s84 = sadd.s32 %s83, 1
    %p87 = scmp.eq.s32.totalorder %s9, 1
    %p88 = scmp.ne.s32.totalorder %s83, %s85
    %p89 = scmp.eq.s32.totalorder %s9, 0
    %p90 = por %p88, %p89
    %p91 = scmp.ne.s32.totalorder %s83, %s85
    %p92 = scmp.eq.s32.totalorder %s14, 1
    %p93 = por %p91, %p92
    %p94 = scmp.ne.s32.totalorder %s85, %s86
    %p95 = scmp.eq.s32.totalorder %s14, 0
    %p96 = por %p94, %p95
    %p97 = scmp.ne.s32.totalorder %s85, %s86
    %p98 = scmp.eq.s32.totalorder %s15, 1
    %p99 = por %p97, %p98
    %p101 = scmp.ne.s32.totalorder %s86, %s100
    %p102 = scmp.eq.s32.totalorder %s15, 0
    %p103 = por %p101, %p102
    %s104 = ssub.s32 %s16, %s28
    %s105 = ssub.s32 %s17, %s24
    %s106 = sor.u32 %s104, %s105
    %p107 = scmp.eq.s32.totalorder %s106, 0
    %s109 = sadd.s32 %s108, 1
    %s110 = scalar_select %p107, %s108, %s109
    %p113 = pneg %p107
    %p114 = scmp.eq.s32.totalorder %s9, 1
    %p115 = por %p113, %p114
    %p116 = scmp.ne.s32.totalorder %s108, %s111
    %p117 = scmp.eq.s32.totalorder %s9, 0
    %p118 = por %p116, %p117
    %p119 = scmp.ne.s32.totalorder %s108, %s111
    %p120 = scmp.eq.s32.totalorder %s14, 1
    %p121 = por %p119, %p120
    %p122 = scmp.ne.s32.totalorder %s111, %s112
    %p123 = scmp.eq.s32.totalorder %s14, 0
    %p124 = por %p122, %p123
    %p125 = scmp.ne.s32.totalorder %s111, %s112
    %p126 = scmp.eq.s32.totalorder %s15, 1
    %p127 = por %p125, %p126
    %p129 = scmp.ne.s32.totalorder %s112, %s128
    %p130 = scmp.eq.s32.totalorder %s15, 0
    %p131 = por %p129, %p130
    %p132 = scmp.le.s32.totalorder 1, %s9
    %p133 = scmp.lt.s32.totalorder %s9, 3
    %p134 = pnand %p132, %p133
    %p135 = pneg %p134
    // Predicated region
    $region9: #{compnet_forward_pallas.5} parent=5 // pred_check
      _
    $region10: #{compnet_forward_pallas.5} parent=5 // pred_check_branch
      %137 = sbr.rel (%p134) target = $region12
    $region11: #{compnet_forward_pallas.5} parent=5 // pred_region
      %s138 = ssub.s32 %s9, 1
      // Predicated region
      $region13: #{compnet_forward_pallas.5} parent=11 // pred_check
        %p139 = pneg %p75
      $region14: #{compnet_forward_pallas.5} parent=11 // pred_check_branch
        %141 = sbr.rel (%p139) target = $region16
      $region15: #{compnet_forward_pallas.5} parent=11 // pred_region
        %p142 = scmp.lt.s32.totalorder %s18, 0
        %s143 = scalar_select %p142, %s18, 0
        %s144 = smul.addr %s143, 128
        %s145 = smul.addr %s144, 8
        %s146 = scalar_lea.vmem %s1, %s145
      $region16: #{compnet_forward_pallas.5} parent=11 // pred_fallthru
        _
      // Predicated region
      $region17: #{compnet_forward_pallas.5} parent=11 // pred_check
        %p147 = pneg %p96
      $region18: #{compnet_forward_pallas.5} parent=11 // pred_check_branch
        %149 = sbr.rel (%p147) target = $region20
      $region19: #{compnet_forward_pallas.5} parent=11 // pred_region
        _
      $region20: #{compnet_forward_pallas.5} parent=11 // pred_fallthru
        _
    $region12: #{compnet_forward_pallas.5} parent=5 // pred_fallthru
      _
    %p150 = scmp.lt.s32.totalorder %s9, 2
    // Predicated region
    $region21: #{compnet_forward_pallas.5} parent=5 // pred_check
      %p151 = pneg %p150
    $region22: #{compnet_forward_pallas.5} parent=5 // pred_check_branch
      %153 = sbr.rel (%p151) target = $region24
    $region23: #{compnet_forward_pallas.5} parent=5 // pred_region
      // Predicated region
      $region25: #{compnet_forward_pallas.5} parent=23 // pred_check
        %p154 = pneg %p43
      $region26: #{compnet_forward_pallas.5} parent=23 // pred_check_branch
        %156 = sbr.rel (%p154) target = $region28
      $region27: #{compnet_forward_pallas.5} parent=23 // pred_region
        %s157 = smul.u32 2, %s17
        %p158 = scmp.lt.s32.totalorder %s16, 0
        %s159 = scalar_select %p158, %s16, 0
        %p160 = scmp.lt.s32.totalorder %s157, 3
        %s161 = scalar_select %p160, %s157, 3
        %s162 = smul.addr %s161, 8
        %s163 = smul.addr %s159, 32
        %s164 = sadd.s32 %s162, %s163
        %s165 = smul.addr %s164, 8
        %s166 = scalar_lea.vmem %s0, %s165
        %s167 = smul.u32 2, %s17
      $region28: #{compnet_forward_pallas.5} parent=23 // pred_fallthru
        _
    $region24: #{compnet_forward_pallas.5} parent=5 // pred_fallthru
      _
    %p168 = scmp.le.s32.totalorder 1, %s9
    %p169 = scmp.lt.s32.totalorder %s9, 3
    %p170 = pnand %p168, %p169
    %p171 = pneg %p170
    // Predicated region
    $region29: #{compnet_forward_pallas.5} parent=5 // pred_check
      _
    $region30: #{compnet_forward_pallas.5} parent=5 // pred_check_branch
      %173 = sbr.rel (%p170) target = $region32
    $region31: #{compnet_forward_pallas.5} parent=5 // pred_region
      %s174 = ssub.s32 %s9, 1
      %s175 = smul.u32 2, %s19
      %p176 = scmp.lt.s32.totalorder %s18, 0
      %s177 = scalar_select %p176, %s18, 0
      %p178 = scmp.lt.s32.totalorder %s175, 3
      %s179 = scalar_select %p178, %s175, 3
      %s180 = smul.addr %s179, 8
      %s181 = smul.addr %s177, 32
      %s182 = sadd.s32 %s180, %s181
      %s183 = smul.addr %s182, 8
      %s184 = scalar_lea.vmem %s0, %s183
      %p185 = pneg %p49
      %p186 = pneg %p46
      %p187 = scmp.lt.s32.totalorder %s18, 0
      %s188 = scalar_select %p187, %s18, 0
      %s189 = smul.addr %s188, 128
      %s190 = smul.addr %s189, 8
      %s191 = scalar_lea.vmem %s1, %s190
      %p192 = pneg %p75
      %p193 = pneg %p72
      %p194 = pneg %p96
      %p195 = pneg %p93
      %p196 = pneg %p124
      %p197 = pneg %p121
      %s198 = smul.u32 2, %s19
      %p199 = scmp.lt.s32.totalorder %s18, 0
      %s200 = scalar_select %p199, %s18, 0
      %p201 = scmp.lt.s32.totalorder %s198, 3
      %s202 = scalar_select %p201, %s198, 3
      %s203 = smul.addr %s200, 4
      %s204 = sadd.s32 %s202, %s203
      %s205 = smul.addr %s204, 8
      %s206 = scalar_lea.vmem %s3, %s205
      %s207 = smul.u32 2, %s19
      %p208 = scmp.lt.s32.totalorder %s18, 0
      %s209 = scalar_select %p208, %s18, 0
      %p210 = scmp.lt.s32.totalorder %s207, 3
      %s211 = scalar_select %p210, %s207, 3
      %s212 = smul.addr %s211, 8
      %s213 = smul.addr %s209, 32
      %s214 = sadd.s32 %s212, %s213
      %s215 = smul.addr %s214, 8
      %s216 = scalar_lea.vmem %s0, %s215
      %s217 = smul.u32 2, %s19
      %p218 = scmp.lt.s32.totalorder %s18, 0
      %s219 = scalar_select %p218, %s18, 0
      %s220 = smul.addr %s219, 128
      %s221 = smul.addr %s220, 8
      %s222 = scalar_lea.vmem %s1, %s221
      %s223 = smul.u32 2, %s19
      %p224 = scmp.lt.s32.totalorder %s18, 0
      %s225 = scalar_select %p224, %s18, 0
      %p226 = scmp.lt.s32.totalorder %s223, 3
      %s227 = scalar_select %p226, %s223, 3
      %s228 = smul.addr %s225, 4
      %s229 = sadd.s32 %s227, %s228
      %s230 = smul.addr %s229, 8
      %s231 = scalar_lea.vmem %s3, %s230
      %s232 = smul.u32 2, %s19
      %v233 = vld [vmem:[%s216] sm:$0xff]
      %v234 = vld [vmem:[%s216 + $0x8] sm:$0xff]
      %v235 = vld [vmem:[%s216 + $0x10] sm:$0xff]
      %v236 = vld [vmem:[%s216 + $0x18] sm:$0xff]
      %v237 = vld [vmem:[%s216 + $0x20] sm:$0xff]
      %v238 = vld [vmem:[%s216 + $0x28] sm:$0xff]
      %v239 = vld [vmem:[%s216 + $0x30] sm:$0xff]
      %v240 = vld [vmem:[%s216 + $0x38] sm:$0xff]
      %v241 = vld [vmem:[%s216 + $0x40] sm:$0xff]
      %v242 = vld [vmem:[%s216 + $0x48] sm:$0xff]
      %v243 = vld [vmem:[%s216 + $0x50] sm:$0xff]
      %v244 = vld [vmem:[%s216 + $0x58] sm:$0xff]
      %v245 = vld [vmem:[%s216 + $0x60] sm:$0xff]
      %v246 = vld [vmem:[%s216 + $0x68] sm:$0xff]
      %v247 = vld [vmem:[%s216 + $0x70] sm:$0xff]
      %v248 = vld [vmem:[%s216 + $0x78] sm:$0xff]
      %v249 = vld [vmem:[%s222] sm:$0xff]
      %v250 = vld [vmem:[%s222 + $0x8] sm:$0xff]
      %v251 = vld [vmem:[%s222 + $0x10] sm:$0xff]
      %v252 = vld [vmem:[%s222 + $0x18] sm:$0xff]
      %v253 = vld [vmem:[%s222 + $0x20] sm:$0xff]
      %v254 = vld [vmem:[%s222 + $0x28] sm:$0xff]
      %v255 = vld [vmem:[%s222 + $0x30] sm:$0xff]
      %v256 = vld [vmem:[%s222 + $0x38] sm:$0xff]
      %v257 = vld [vmem:[%s222 + $0x40] sm:$0xff]
      %v258 = vld [vmem:[%s222 + $0x48] sm:$0xff]
      %v259 = vld [vmem:[%s222 + $0x50] sm:$0xff]
      %v260 = vld [vmem:[%s222 + $0x58] sm:$0xff]
      %v261 = vld [vmem:[%s222 + $0x60] sm:$0xff]
      %v262 = vld [vmem:[%s222 + $0x68] sm:$0xff]
      %v263 = vld [vmem:[%s222 + $0x70] sm:$0xff]
      %v264 = vld [vmem:[%s222 + $0x78] sm:$0xff]
      %v265 = vld [vmem:[%s222 + $0x80] sm:$0xff]
      %v266 = vld [vmem:[%s222 + $0x88] sm:$0xff]
      %v267 = vld [vmem:[%s222 + $0x90] sm:$0xff]
      %v268 = vld [vmem:[%s222 + $0x98] sm:$0xff]
      %v269 = vld [vmem:[%s222 + $0xa0] sm:$0xff]
      %v270 = vld [vmem:[%s222 + $0xa8] sm:$0xff]
      %v271 = vld [vmem:[%s222 + $0xb0] sm:$0xff]
      %v272 = vld [vmem:[%s222 + $0xb8] sm:$0xff]
      %v273 = vld [vmem:[%s222 + $0xc0] sm:$0xff]
      %v274 = vld [vmem:[%s222 + $0xc8] sm:$0xff]
      %v275 = vld [vmem:[%s222 + $0xd0] sm:$0xff]
      %v276 = vld [vmem:[%s222 + $0xd8] sm:$0xff]
      %v277 = vld [vmem:[%s222 + $0xe0] sm:$0xff]
      %v278 = vld [vmem:[%s222 + $0xe8] sm:$0xff]
      %v279 = vld [vmem:[%s222 + $0xf0] sm:$0xff]
      %v280 = vld [vmem:[%s222 + $0xf8] sm:$0xff]
      %v281 = vld [vmem:[%s222 + $0x100] sm:$0xff]
      %v282 = vld [vmem:[%s222 + $0x108] sm:$0xff]
      %v283 = vld [vmem:[%s222 + $0x110] sm:$0xff]
      %v284 = vld [vmem:[%s222 + $0x118] sm:$0xff]
      %v285 = vld [vmem:[%s222 + $0x120] sm:$0xff]
      %v286 = vld [vmem:[%s222 + $0x128] sm:$0xff]
      %v287 = vld [vmem:[%s222 + $0x130] sm:$0xff]
      %v288 = vld [vmem:[%s222 + $0x138] sm:$0xff]
      %v289 = vld [vmem:[%s222 + $0x140] sm:$0xff]
      %v290 = vld [vmem:[%s222 + $0x148] sm:$0xff]
      %v291 = vld [vmem:[%s222 + $0x150] sm:$0xff]
      %v292 = vld [vmem:[%s222 + $0x158] sm:$0xff]
      %v293 = vld [vmem:[%s222 + $0x160] sm:$0xff]
      %v294 = vld [vmem:[%s222 + $0x168] sm:$0xff]
      %v295 = vld [vmem:[%s222 + $0x170] sm:$0xff]
      %v296 = vld [vmem:[%s222 + $0x178] sm:$0xff]
      %v297 = vld [vmem:[%s222 + $0x180] sm:$0xff]
      %v298 = vld [vmem:[%s222 + $0x188] sm:$0xff]
      %v299 = vld [vmem:[%s222 + $0x190] sm:$0xff]
      %v300 = vld [vmem:[%s222 + $0x198] sm:$0xff]
      %v301 = vld [vmem:[%s222 + $0x1a0] sm:$0xff]
      %v302 = vld [vmem:[%s222 + $0x1a8] sm:$0xff]
      %v303 = vld [vmem:[%s222 + $0x1b0] sm:$0xff]
      %v304 = vld [vmem:[%s222 + $0x1b8] sm:$0xff]
      %v305 = vld [vmem:[%s222 + $0x1c0] sm:$0xff]
      %v306 = vld [vmem:[%s222 + $0x1c8] sm:$0xff]
      %v307 = vld [vmem:[%s222 + $0x1d0] sm:$0xff]
      %v308 = vld [vmem:[%s222 + $0x1d8] sm:$0xff]
      %v309 = vld [vmem:[%s222 + $0x1e0] sm:$0xff]
      %v310 = vld [vmem:[%s222 + $0x1e8] sm:$0xff]
      %v311 = vld [vmem:[%s222 + $0x1f0] sm:$0xff]
      %v312 = vld [vmem:[%s222 + $0x1f8] sm:$0xff]
      %v313 = vld [vmem:[%s222 + $0x200] sm:$0xff]
      %v314 = vld [vmem:[%s222 + $0x208] sm:$0xff]
      %v315 = vld [vmem:[%s222 + $0x210] sm:$0xff]
      %v316 = vld [vmem:[%s222 + $0x218] sm:$0xff]
      %v317 = vld [vmem:[%s222 + $0x220] sm:$0xff]
      %v318 = vld [vmem:[%s222 + $0x228] sm:$0xff]
      %v319 = vld [vmem:[%s222 + $0x230] sm:$0xff]
      %v320 = vld [vmem:[%s222 + $0x238] sm:$0xff]
      %v321 = vld [vmem:[%s222 + $0x240] sm:$0xff]
      %v322 = vld [vmem:[%s222 + $0x248] sm:$0xff]
      %v323 = vld [vmem:[%s222 + $0x250] sm:$0xff]
      %v324 = vld [vmem:[%s222 + $0x258] sm:$0xff]
      %v325 = vld [vmem:[%s222 + $0x260] sm:$0xff]
      %v326 = vld [vmem:[%s222 + $0x268] sm:$0xff]
      %v327 = vld [vmem:[%s222 + $0x270] sm:$0xff]
      %v328 = vld [vmem:[%s222 + $0x278] sm:$0xff]
      %v329 = vld [vmem:[%s222 + $0x280] sm:$0xff]
      %v330 = vld [vmem:[%s222 + $0x288] sm:$0xff]
      %v331 = vld [vmem:[%s222 + $0x290] sm:$0xff]
      %v332 = vld [vmem:[%s222 + $0x298] sm:$0xff]
      %v333 = vld [vmem:[%s222 + $0x2a0] sm:$0xff]
      %v334 = vld [vmem:[%s222 + $0x2a8] sm:$0xff]
      %v335 = vld [vmem:[%s222 + $0x2b0] sm:$0xff]
      %v336 = vld [vmem:[%s222 + $0x2b8] sm:$0xff]
      %v337 = vld [vmem:[%s222 + $0x2c0] sm:$0xff]
      %v338 = vld [vmem:[%s222 + $0x2c8] sm:$0xff]
      %v339 = vld [vmem:[%s222 + $0x2d0] sm:$0xff]
      %v340 = vld [vmem:[%s222 + $0x2d8] sm:$0xff]
      %v341 = vld [vmem:[%s222 + $0x2e0] sm:$0xff]
      %v342 = vld [vmem:[%s222 + $0x2e8] sm:$0xff]
      %v343 = vld [vmem:[%s222 + $0x2f0] sm:$0xff]
      %v344 = vld [vmem:[%s222 + $0x2f8] sm:$0xff]
      %v345 = vld [vmem:[%s222 + $0x300] sm:$0xff]
      %v346 = vld [vmem:[%s222 + $0x308] sm:$0xff]
      %v347 = vld [vmem:[%s222 + $0x310] sm:$0xff]
      %v348 = vld [vmem:[%s222 + $0x318] sm:$0xff]
      %v349 = vld [vmem:[%s222 + $0x320] sm:$0xff]
      %v350 = vld [vmem:[%s222 + $0x328] sm:$0xff]
      %v351 = vld [vmem:[%s222 + $0x330] sm:$0xff]
      %v352 = vld [vmem:[%s222 + $0x338] sm:$0xff]
      %v353 = vld [vmem:[%s222 + $0x340] sm:$0xff]
      %v354 = vld [vmem:[%s222 + $0x348] sm:$0xff]
      %v355 = vld [vmem:[%s222 + $0x350] sm:$0xff]
      %v356 = vld [vmem:[%s222 + $0x358] sm:$0xff]
      %v357 = vld [vmem:[%s222 + $0x360] sm:$0xff]
      %v358 = vld [vmem:[%s222 + $0x368] sm:$0xff]
      %v359 = vld [vmem:[%s222 + $0x370] sm:$0xff]
      %v360 = vld [vmem:[%s222 + $0x378] sm:$0xff]
      %v361 = vld [vmem:[%s222 + $0x380] sm:$0xff]
      %v362 = vld [vmem:[%s222 + $0x388] sm:$0xff]
      %v363 = vld [vmem:[%s222 + $0x390] sm:$0xff]
      %v364 = vld [vmem:[%s222 + $0x398] sm:$0xff]
      %v365 = vld [vmem:[%s222 + $0x3a0] sm:$0xff]
      %v366 = vld [vmem:[%s222 + $0x3a8] sm:$0xff]
      %v367 = vld [vmem:[%s222 + $0x3b0] sm:$0xff]
      %v368 = vld [vmem:[%s222 + $0x3b8] sm:$0xff]
      %v369 = vld [vmem:[%s222 + $0x3c0] sm:$0xff]
      %v370 = vld [vmem:[%s222 + $0x3c8] sm:$0xff]
      %v371 = vld [vmem:[%s222 + $0x3d0] sm:$0xff]
      %v372 = vld [vmem:[%s222 + $0x3d8] sm:$0xff]
      %v373 = vld [vmem:[%s222 + $0x3e0] sm:$0xff]
      %v374 = vld [vmem:[%s222 + $0x3e8] sm:$0xff]
      %v375 = vld [vmem:[%s222 + $0x3f0] sm:$0xff]
      %v376 = vld [vmem:[%s222 + $0x3f8] sm:$0xff]
      %v377 = vld [vmem:[%s2] sm:$0x1]
      %v379 = vperm.slane %v377, 0
      %381 = vmatpush.msra.mxu0 %v264
      %382 = vmatpush.msra.mxu0 %v263
      %383 = vmatpush.msra.mxu0 %v262
      %384 = vmatpush.msra.mxu0 %v261
      %385 = vmatpush.msra.mxu0 %v260
      %386 = vmatpush.msra.mxu0 %v259
      %387 = vmatpush.msra.mxu0 %v258
      %388 = vmatpush.msra.mxu0 %v257
      %389 = vmatpush.msra.mxu0 %v256
      %390 = vmatpush.msra.mxu0 %v255
      %391 = vmatpush.msra.mxu0 %v254
      %392 = vmatpush.msra.mxu0 %v253
      %393 = vmatpush.msra.mxu0 %v252
      %394 = vmatpush.msra.mxu0 %v251
      %395 = vmatpush.msra.mxu0 %v250
      %396 = vmatpush.msra.mxu0 %v249
      %397 = vmatmul.f32.gmra.mxu0 %v233
      %v398 = vpop.f32.mrf.mxu0
      %v399 = vadd.f32 %v379, %v398
      %400 = vmatmul.f32.gmra.mxu0 %v241
      %v401 = vpop.f32.mrf.mxu0
      %v402 = vadd.f32 %v379, %v401
      %403 = vdwg.mxu0
      %404 = vmatpush.msra.mxu0 %v280
      %405 = vmatpush.msra.mxu0 %v279
      %406 = vmatpush.msra.mxu0 %v278
      %407 = vmatpush.msra.mxu0 %v277
      %408 = vmatpush.msra.mxu0 %v276
      %409 = vmatpush.msra.mxu0 %v275
      %410 = vmatpush.msra.mxu0 %v274
      %411 = vmatpush.msra.mxu0 %v273
      %412 = vmatpush.msra.mxu0 %v272
      %413 = vmatpush.msra.mxu0 %v271
      %414 = vmatpush.msra.mxu0 %v270
      %415 = vmatpush.msra.mxu0 %v269
      %416 = vmatpush.msra.mxu0 %v268
      %417 = vmatpush.msra.mxu0 %v267
      %418 = vmatpush.msra.mxu0 %v266
      %419 = vmatpush.msra.mxu0 %v265
      %420 = vmatmul.f32.gmra.mxu0 %v234
      %v421 = vpop.f32.mrf.mxu0
      %v422 = vadd.f32 %v399, %v421
      %423 = vmatmul.f32.gmra.mxu0 %v242
      %v424 = vpop.f32.mrf.mxu0
      %v425 = vadd.f32 %v402, %v424
      %426 = vdwg.mxu0
      %427 = vmatpush.msra.mxu0 %v296
      %428 = vmatpush.msra.mxu0 %v295
      %429 = vmatpush.msra.mxu0 %v294
      %430 = vmatpush.msra.mxu0 %v293
      %431 = vmatpush.msra.mxu0 %v292
      %432 = vmatpush.msra.mxu0 %v291
      %433 = vmatpush.msra.mxu0 %v290
      %434 = vmatpush.msra.mxu0 %v289
      %435 = vmatpush.msra.mxu0 %v288
      %436 = vmatpush.msra.mxu0 %v287
      %437 = vmatpush.msra.mxu0 %v286
      %438 = vmatpush.msra.mxu0 %v285
      %439 = vmatpush.msra.mxu0 %v284
      %440 = vmatpush.msra.mxu0 %v283
      %441 = vmatpush.msra.mxu0 %v282
      %442 = vmatpush.msra.mxu0 %v281
      %443 = vmatmul.f32.gmra.mxu0 %v235
      %v444 = vpop.f32.mrf.mxu0
      %v445 = vadd.f32 %v422, %v444
      %446 = vmatmul.f32.gmra.mxu0 %v243
      %v447 = vpop.f32.mrf.mxu0
      %v448 = vadd.f32 %v425, %v447
      %449 = vdwg.mxu0
      %450 = vmatpush.msra.mxu0 %v312
      %451 = vmatpush.msra.mxu0 %v311
      %452 = vmatpush.msra.mxu0 %v310
      %453 = vmatpush.msra.mxu0 %v309
      %454 = vmatpush.msra.mxu0 %v308
      %455 = vmatpush.msra.mxu0 %v307
      %456 = vmatpush.msra.mxu0 %v306
      %457 = vmatpush.msra.mxu0 %v305
      %458 = vmatpush.msra.mxu0 %v304
      %459 = vmatpush.msra.mxu0 %v303
      %460 = vmatpush.msra.mxu0 %v302
      %461 = vmatpush.msra.mxu0 %v301
      %462 = vmatpush.msra.mxu0 %v300
      %463 = vmatpush.msra.mxu0 %v299
      %464 = vmatpush.msra.mxu0 %v298
      %465 = vmatpush.msra.mxu0 %v297
      %466 = vmatmul.f32.gmra.mxu0 %v236
      %v467 = vpop.f32.mrf.mxu0
      %v468 = vadd.f32 %v445, %v467
      %469 = vmatmul.f32.gmra.mxu0 %v244
      %v470 = vpop.f32.mrf.mxu0
      %v471 = vadd.f32 %v448, %v470
      %472 = vdwg.mxu0
      %473 = vmatpush.msra.mxu0 %v328
      %474 = vmatpush.msra.mxu0 %v327
      %475 = vmatpush.msra.mxu0 %v326
      %476 = vmatpush.msra.mxu0 %v325
      %477 = vmatpush.msra.mxu0 %v324
      %478 = vmatpush.msra.mxu0 %v323
      %479 = vmatpush.msra.mxu0 %v322
      %480 = vmatpush.msra.mxu0 %v321
      %481 = vmatpush.msra.mxu0 %v320
      %482 = vmatpush.msra.mxu0 %v319
      %483 = vmatpush.msra.mxu0 %v318
      %484 = vmatpush.msra.mxu0 %v317
      %485 = vmatpush.msra.mxu0 %v316
      %486 = vmatpush.msra.mxu0 %v315
      %487 = vmatpush.msra.mxu0 %v314
      %488 = vmatpush.msra.mxu0 %v313
      %489 = vmatmul.f32.gmra.mxu0 %v237
      %v490 = vpop.f32.mrf.mxu0
      %v491 = vadd.f32 %v468, %v490
      %492 = vmatmul.f32.gmra.mxu0 %v245
      %v493 = vpop.f32.mrf.mxu0
      %v494 = vadd.f32 %v471, %v493
      %495 = vdwg.mxu0
      %496 = vmatpush.msra.mxu0 %v344
      %497 = vmatpush.msra.mxu0 %v343
      %498 = vmatpush.msra.mxu0 %v342
      %499 = vmatpush.msra.mxu0 %v341
      %500 = vmatpush.msra.mxu0 %v340
      %501 = vmatpush.msra.mxu0 %v339
      %502 = vmatpush.msra.mxu0 %v338
      %503 = vmatpush.msra.mxu0 %v337
      %504 = vmatpush.msra.mxu0 %v336
      %505 = vmatpush.msra.mxu0 %v335
      %506 = vmatpush.msra.mxu0 %v334
      %507 = vmatpush.msra.mxu0 %v333
      %508 = vmatpush.msra.mxu0 %v332
      %509 = vmatpush.msra.mxu0 %v331
      %510 = vmatpush.msra.mxu0 %v330
      %511 = vmatpush.msra.mxu0 %v329
      %512 = vmatmul.f32.gmra.mxu0 %v238
      %v513 = vpop.f32.mrf.mxu0
      %v514 = vadd.f32 %v491, %v513
      %515 = vmatmul.f32.gmra.mxu0 %v246
      %v516 = vpop.f32.mrf.mxu0
      %v517 = vadd.f32 %v494, %v516
      %518 = vdwg.mxu0
      %519 = vmatpush.msra.mxu0 %v360
      %520 = vmatpush.msra.mxu0 %v359
      %521 = vmatpush.msra.mxu0 %v358
      %522 = vmatpush.msra.mxu0 %v357
      %523 = vmatpush.msra.mxu0 %v356
      %524 = vmatpush.msra.mxu0 %v355
      %525 = vmatpush.msra.mxu0 %v354
      %526 = vmatpush.msra.mxu0 %v353
      %527 = vmatpush.msra.mxu0 %v352
      %528 = vmatpush.msra.mxu0 %v351
      %529 = vmatpush.msra.mxu0 %v350
      %530 = vmatpush.msra.mxu0 %v349
      %531 = vmatpush.msra.mxu0 %v348
      %532 = vmatpush.msra.mxu0 %v347
      %533 = vmatpush.msra.mxu0 %v346
      %534 = vmatpush.msra.mxu0 %v345
      %535 = vmatmul.f32.gmra.mxu0 %v239
      %v536 = vpop.f32.mrf.mxu0
      %v537 = vadd.f32 %v514, %v536
      %538 = vmatmul.f32.gmra.mxu0 %v247
      %v539 = vpop.f32.mrf.mxu0
      %v540 = vadd.f32 %v517, %v539
      %541 = vdwg.mxu0
      %542 = vmatpush.msra.mxu0 %v376
      %543 = vmatpush.msra.mxu0 %v375
      %544 = vmatpush.msra.mxu0 %v374
      %545 = vmatpush.msra.mxu0 %v373
      %546 = vmatpush.msra.mxu0 %v372
      %547 = vmatpush.msra.mxu0 %v371
      %548 = vmatpush.msra.mxu0 %v370
      %549 = vmatpush.msra.mxu0 %v369
      %550 = vmatpush.msra.mxu0 %v368
      %551 = vmatpush.msra.mxu0 %v367
      %552 = vmatpush.msra.mxu0 %v366
      %553 = vmatpush.msra.mxu0 %v365
      %554 = vmatpush.msra.mxu0 %v364
      %555 = vmatpush.msra.mxu0 %v363
      %556 = vmatpush.msra.mxu0 %v362
      %557 = vmatpush.msra.mxu0 %v361
      %558 = vmatmul.f32.gmra.mxu0 %v240
      %v559 = vpop.f32.mrf.mxu0
      %v560 = vadd.f32 %v537, %v559
      %561 = vmatmul.f32.gmra.mxu0 %v248
      %v562 = vpop.f32.mrf.mxu0
      %v563 = vadd.f32 %v540, %v562
      %564 = vdwg.mxu0
      %v565 = vmax.f32 %v560, 0.0
      %v566 = vmax.f32 %v563, 0.0
      %567 = vst [vmem:[%s231] sm:$0xff] %v565
      %568 = vst [vmem:[%s231 + $0x8] sm:$0xff] %v566
      %s569 = smul.u32 2, %s19
      %p570 = scmp.lt.s32.totalorder %s18, 0
      %s571 = scalar_select %p570, %s18, 0
      %p572 = scmp.lt.s32.totalorder %s569, 3
      %s573 = scalar_select %p572, %s569, 3
      %s574 = smul.addr %s571, 4
      %s575 = sadd.s32 %s573, %s574
      %s576 = smul.addr %s575, 8
      %s577 = scalar_lea.vmem %s3, %s576
      // Predicated region
      $region33: #{compnet_forward_pallas.5} parent=31 // pred_check
        %p578 = pneg %p121
      $region34: #{compnet_forward_pallas.5} parent=31 // pred_check_branch
        %580 = sbr.rel (%p578) target = $region36
      $region35: #{compnet_forward_pallas.5} parent=31 // pred_region
        %s581 = smul.u32 2, %s19
      $region36: #{compnet_forward_pallas.5} parent=31 // pred_fallthru
        _
    $region32: #{compnet_forward_pallas.5} parent=5 // pred_fallthru
      _
    %p582 = scmp.le.s32.totalorder 2, %s9
    // Predicated region
    $region37: #{compnet_forward_pallas.5} parent=5 // pred_check
      %p583 = pneg %p582
    $region38: #{compnet_forward_pallas.5} parent=5 // pred_check_branch
      %585 = sbr.rel (%p583) target = $region40
    $region39: #{compnet_forward_pallas.5} parent=5 // pred_region
      %s586 = ssub.s32 %s9, 2
      // Predicated region
      $region41: #{compnet_forward_pallas.5} parent=39 // pred_check
        %p587 = pneg %p127
      $region42: #{compnet_forward_pallas.5} parent=39 // pred_check_branch
        %589 = sbr.rel (%p587) target = $region44
      $region43: #{compnet_forward_pallas.5} parent=39 // pred_region
        %s590 = smul.u32 2, %s21
        %p591 = scmp.lt.s32.totalorder %s20, 0
        %s592 = scalar_select %p591, %s20, 0
        %p593 = scmp.lt.s32.totalorder %s590, 3
        %s594 = scalar_select %p593, %s590, 3
        %s595 = smul.addr %s592, 4
        %s596 = sadd.s32 %s594, %s595
        %s597 = smul.addr %s596, 8
        %s598 = scalar_lea.vmem %s3, %s597
      $region44: #{compnet_forward_pallas.5} parent=39 // pred_fallthru
        _
    $region40: #{compnet_forward_pallas.5} parent=5 // pred_fallthru
      _
  $region6: #{compnet_forward_pallas.5} parent=0 // loop_footer
    %s13 = sadd.s32 1, %s9
  $region7: #{compnet_forward_pallas.5} parent=0 // loop_footer_branch
    %8 = sbr.rel target = $region3
  $region8: #{compnet_forward_pallas.5} parent=0 // loop_exit
    _

// kernel: compnet_forward_pallas.6
$region0: #{compnet_forward_pallas.6}
  #allocation0 [shape = 'u32[]', space=smem, size = 0x4, offset = 0x4, fixed_abs, tag = 'smem constant byte address 0x4 - core index']
  #allocation1 [shape = 'u32[72,128]{1,0:T(1,128)}', space=vmem, size = 0x9000, scoped, tag = 'internal scratch']
  %s0 = inlined_call_operand.vmem [shape: f32[4,32,512], index: 0, kind: input, shape index: {}]
  %s1 = inlined_call_operand.vmem [shape: f32[4,512,128], index: 1, kind: input, shape index: {}]
  %s2 = inlined_call_operand.vmem [shape: f32[1,128], index: 2, kind: input, shape index: {}]
  %s3 = inlined_call_operand.vmem [shape: f32[4,32,64], index: 3, kind: output, shape index: {}]
  %s4 = sld [smem:[#allocation0]]
  $region45: #{compnet_forward_pallas.6} parent=0
    _
  %s6 = ssub.s32 1, %s4
  %s7 = scalar_select 0, %s6, %s4
  loop: start=0, step=1, limit=6
  $region2: #{compnet_forward_pallas.6} parent=0 // loop_pre_header
    _
  $region3: #{compnet_forward_pallas.6} parent=0 // loop_header
    %s9 = sphi 0, %s13
    %p10 = scmp.ge.s32.totalorder %s9, 6
    %s16 = sphi 0, %s28
    %s17 = sphi 0, %s24
    %s18 = sphi 0, %s16
    %s19 = sphi 0, %s17
    %s20 = sphi 0, %s18
    %s21 = sphi 0, %s19
    %s33 = sphi 0, %s35
    %s36 = sphi 0, %s33
    %s37 = sphi 0, %s36
    %s53 = sphi 0, %s37
    %s59 = sphi 0, %s61
    %s62 = sphi 0, %s59
    %s63 = sphi 0, %s62
    %s79 = sphi 0, %s63
    %s83 = sphi 0, %s83
    %s85 = sphi 0, %s83
    %s86 = sphi 0, %s85
    %s100 = sphi 0, %s86
    %s108 = sphi 0, %s110
    %s111 = sphi 0, %s108
    %s112 = sphi 0, %s111
    %s128 = sphi 0, %s112
  $region4: #{compnet_forward_pallas.6} parent=0 // loop_header_branch
    %12 = sbr.rel (%p10) target = $region8
  $region5: #{compnet_forward_pallas.6} parent=0 // loop_body
    %s14 = ssub.s32 %s9, 1
    %s15 = ssub.s32 %s9, 2
    %s22 = sadd.s32 1, %s17
    %p23 = scmp.ge.s32.totalorder %s22, 1
    %s24 = scalar_select %p23, 0, %s22
    %s25 = sadd.s32 1, %s16
    %s26 = scalar_select %p23, %s25, %s16
    %p27 = scmp.ge.s32.totalorder %s26, 4
    %s28 = scalar_select %p27, 0, %s26
    %s29 = ssub.s32 %s16, %s28
    %s30 = ssub.s32 %s17, %s24
    %s31 = sor.u32 %s29, %s30
    %p32 = scmp.eq.s32.totalorder %s31, 0
    %s34 = sadd.s32 %s33, 1
    %s35 = scalar_select %p32, %s33, %s34
    %p38 = pneg %p32
    %p39 = scmp.eq.s32.totalorder %s9, 3
    %p40 = por %p38, %p39
    %p41 = scmp.ne.s32.totalorder %s33, %s36
    %p42 = scmp.eq.s32.totalorder %s9, 0
    %p43 = por %p41, %p42
    %p44 = scmp.ne.s32.totalorder %s33, %s36
    %p45 = scmp.eq.s32.totalorder %s14, 3
    %p46 = por %p44, %p45
    %p47 = scmp.ne.s32.totalorder %s36, %s37
    %p48 = scmp.eq.s32.totalorder %s14, 0
    %p49 = por %p47, %p48
    %p50 = scmp.ne.s32.totalorder %s36, %s37
    %p51 = scmp.eq.s32.totalorder %s15, 3
    %p52 = por %p50, %p51
    %p54 = scmp.ne.s32.totalorder %s37, %s53
    %p55 = scmp.eq.s32.totalorder %s15, 0
    %p56 = por %p54, %p55
    %s57 = ssub.s32 %s16, %s28
    %p58 = scmp.eq.s32.totalorder %s57, 0
    %s60 = sadd.s32 %s59, 1
    %s61 = scalar_select %p58, %s59, %s60
    %p64 = pneg %p58
    %p65 = scmp.eq.s32.totalorder %s9, 3
    %p66 = por %p64, %p65
    %p67 = scmp.ne.s32.totalorder %s59, %s62
    %p68 = scmp.eq.s32.totalorder %s9, 0
    %p69 = por %p67, %p68
    %p70 = scmp.ne.s32.totalorder %s59, %s62
    %p71 = scmp.eq.s32.totalorder %s14, 3
    %p72 = por %p70, %p71
    %p73 = scmp.ne.s32.totalorder %s62, %s63
    %p74 = scmp.eq.s32.totalorder %s14, 0
    %p75 = por %p73, %p74
    %p76 = scmp.ne.s32.totalorder %s62, %s63
    %p77 = scmp.eq.s32.totalorder %s15, 3
    %p78 = por %p76, %p77
    %p80 = scmp.ne.s32.totalorder %s63, %s79
    %p81 = scmp.eq.s32.totalorder %s15, 0
    %p82 = por %p80, %p81
    %s84 = sadd.s32 %s83, 1
    %p87 = scmp.eq.s32.totalorder %s9, 3
    %p88 = scmp.ne.s32.totalorder %s83, %s85
    %p89 = scmp.eq.s32.totalorder %s9, 0
    %p90 = por %p88, %p89
    %p91 = scmp.ne.s32.totalorder %s83, %s85
    %p92 = scmp.eq.s32.totalorder %s14, 3
    %p93 = por %p91, %p92
    %p94 = scmp.ne.s32.totalorder %s85, %s86
    %p95 = scmp.eq.s32.totalorder %s14, 0
    %p96 = por %p94, %p95
    %p97 = scmp.ne.s32.totalorder %s85, %s86
    %p98 = scmp.eq.s32.totalorder %s15, 3
    %p99 = por %p97, %p98
    %p101 = scmp.ne.s32.totalorder %s86, %s100
    %p102 = scmp.eq.s32.totalorder %s15, 0
    %p103 = por %p101, %p102
    %s104 = ssub.s32 %s16, %s28
    %s105 = ssub.s32 %s17, %s24
    %s106 = sor.u32 %s104, %s105
    %p107 = scmp.eq.s32.totalorder %s106, 0
    %s109 = sadd.s32 %s108, 1
    %s110 = scalar_select %p107, %s108, %s109
    %p113 = pneg %p107
    %p114 = scmp.eq.s32.totalorder %s9, 3
    %p115 = por %p113, %p114
    %p116 = scmp.ne.s32.totalorder %s108, %s111
    %p117 = scmp.eq.s32.totalorder %s9, 0
    %p118 = por %p116, %p117
    %p119 = scmp.ne.s32.totalorder %s108, %s111
    %p120 = scmp.eq.s32.totalorder %s14, 3
    %p121 = por %p119, %p120
    %p122 = scmp.ne.s32.totalorder %s111, %s112
    %p123 = scmp.eq.s32.totalorder %s14, 0
    %p124 = por %p122, %p123
    %p125 = scmp.ne.s32.totalorder %s111, %s112
    %p126 = scmp.eq.s32.totalorder %s15, 3
    %p127 = por %p125, %p126
    %p129 = scmp.ne.s32.totalorder %s112, %s128
    %p130 = scmp.eq.s32.totalorder %s15, 0
    %p131 = por %p129, %p130
    %p132 = scmp.le.s32.totalorder 1, %s9
    %p133 = scmp.lt.s32.totalorder %s9, 5
    %p134 = pnand %p132, %p133
    %p135 = pneg %p134
    // Predicated region
    $region9: #{compnet_forward_pallas.6} parent=5 // pred_check
      _
    $region10: #{compnet_forward_pallas.6} parent=5 // pred_check_branch
      %137 = sbr.rel (%p134) target = $region12
    $region11: #{compnet_forward_pallas.6} parent=5 // pred_region
      %s138 = ssub.s32 %s9, 1
      // Predicated region
      $region13: #{compnet_forward_pallas.6} parent=11 // pred_check
        %p139 = pneg %p96
      $region14: #{compnet_forward_pallas.6} parent=11 // pred_check_branch
        %141 = sbr.rel (%p139) target = $region16
      $region15: #{compnet_forward_pallas.6} parent=11 // pred_region
        _
      $region16: #{compnet_forward_pallas.6} parent=11 // pred_fallthru
        _
    $region12: #{compnet_forward_pallas.6} parent=5 // pred_fallthru
      _
    %p142 = scmp.lt.s32.totalorder %s9, 4
    // Predicated region
    $region17: #{compnet_forward_pallas.6} parent=5 // pred_check
      %p143 = pneg %p142
    $region18: #{compnet_forward_pallas.6} parent=5 // pred_check_branch
      %145 = sbr.rel (%p143) target = $region20
    $region19: #{compnet_forward_pallas.6} parent=5 // pred_region
      // Predicated region
      $region21: #{compnet_forward_pallas.6} parent=19 // pred_check
        %p146 = pneg %p43
      $region22: #{compnet_forward_pallas.6} parent=19 // pred_check_branch
        %148 = sbr.rel (%p146) target = $region24
      $region23: #{compnet_forward_pallas.6} parent=19 // pred_region
        %s149 = smul.u32 4, %s17
        %p150 = scmp.lt.s32.totalorder %s16, 3
        %s151 = scalar_select %p150, %s16, 3
        %p152 = scmp.lt.s32.totalorder %s149, 3
        %s153 = scalar_select %p152, %s149, 3
        %s154 = smul.addr %s153, 4
        %s155 = smul.addr %s151, 16
        %s156 = sadd.s32 %s154, %s155
        %s157 = smul.addr %s156, 8
        %s158 = scalar_lea.vmem %s0, %s157
        %s159 = smul.u32 4, %s17
      $region24: #{compnet_forward_pallas.6} parent=19 // pred_fallthru
        _
      // Predicated region
      $region25: #{compnet_forward_pallas.6} parent=19 // pred_check
        %p160 = pneg %p69
      $region26: #{compnet_forward_pallas.6} parent=19 // pred_check_branch
        %162 = sbr.rel (%p160) target = $region28
      $region27: #{compnet_forward_pallas.6} parent=19 // pred_region
        %p163 = scmp.lt.s32.totalorder %s16, 3
        %s164 = scalar_select %p163, %s16, 3
        %s165 = smul.addr %s164, 64
        %s166 = smul.addr %s165, 8
        %s167 = scalar_lea.vmem %s1, %s166
      $region28: #{compnet_forward_pallas.6} parent=19 // pred_fallthru
        _
    $region20: #{compnet_forward_pallas.6} parent=5 // pred_fallthru
      _
    %p168 = scmp.le.s32.totalorder 1, %s9
    %p169 = scmp.lt.s32.totalorder %s9, 5
    %p170 = pnand %p168, %p169
    %p171 = pneg %p170
    // Predicated region
    $region29: #{compnet_forward_pallas.6} parent=5 // pred_check
      _
    $region30: #{compnet_forward_pallas.6} parent=5 // pred_check_branch
      %173 = sbr.rel (%p170) target = $region32
    $region31: #{compnet_forward_pallas.6} parent=5 // pred_region
      %s174 = ssub.s32 %s9, 1
      %s175 = smul.u32 4, %s19
      %p176 = scmp.lt.s32.totalorder %s18, 3
      %s177 = scalar_select %p176, %s18, 3
      %p178 = scmp.lt.s32.totalorder %s175, 3
      %s179 = scalar_select %p178, %s175, 3
      %s180 = smul.addr %s179, 4
      %s181 = smul.addr %s177, 16
      %s182 = sadd.s32 %s180, %s181
      %s183 = smul.addr %s182, 8
      %s184 = scalar_lea.vmem %s0, %s183
      %p185 = pneg %p49
      %p186 = pneg %p46
      %p187 = scmp.lt.s32.totalorder %s18, 3
      %s188 = scalar_select %p187, %s18, 3
      %s189 = smul.addr %s188, 64
      %s190 = smul.addr %s189, 8
      %s191 = scalar_lea.vmem %s1, %s190
      %p192 = pneg %p75
      %p193 = pneg %p72
      %p194 = pneg %p96
      %p195 = pneg %p93
      %p196 = pneg %p124
      %p197 = pneg %p121
      %s198 = smul.u32 4, %s19
      %p199 = scmp.lt.s32.totalorder %s18, 3
      %s200 = scalar_select %p199, %s18, 3
      %p201 = scmp.lt.s32.totalorder %s198, 3
      %s202 = scalar_select %p201, %s198, 3
      %s203 = smul.addr %s200, 4
      %s204 = sadd.s32 %s202, %s203
      %s205 = smul.addr %s204, 8
      %s206 = scalar_lea.vmem %s3, %s205
      %s207 = smul.u32 4, %s19
      %p208 = scmp.lt.s32.totalorder %s18, 3
      %s209 = scalar_select %p208, %s18, 3
      %p210 = scmp.lt.s32.totalorder %s207, 3
      %s211 = scalar_select %p210, %s207, 3
      %s212 = smul.addr %s211, 4
      %s213 = smul.addr %s209, 16
      %s214 = sadd.s32 %s212, %s213
      %s215 = smul.addr %s214, 8
      %s216 = scalar_lea.vmem %s0, %s215
      %s217 = smul.u32 4, %s19
      %p218 = scmp.lt.s32.totalorder %s18, 3
      %s219 = scalar_select %p218, %s18, 3
      %s220 = smul.addr %s219, 64
      %s221 = smul.addr %s220, 8
      %s222 = scalar_lea.vmem %s1, %s221
      %s223 = smul.u32 4, %s19
      %p224 = scmp.lt.s32.totalorder %s18, 3
      %s225 = scalar_select %p224, %s18, 3
      %p226 = scmp.lt.s32.totalorder %s223, 3
      %s227 = scalar_select %p226, %s223, 3
      %s228 = smul.addr %s225, 4
      %s229 = sadd.s32 %s227, %s228
      %s230 = smul.addr %s229, 8
      %s231 = scalar_lea.vmem %s3, %s230
      %s232 = smul.u32 4, %s19
      %v233 = vld [vmem:[%s216] sm:$0xff]
      %v234 = vld [vmem:[%s216 + $0x8] sm:$0xff]
      %v235 = vld [vmem:[%s216 + $0x10] sm:$0xff]
      %v236 = vld [vmem:[%s216 + $0x18] sm:$0xff]
      %v237 = vld [vmem:[%s216 + $0x20] sm:$0xff]
      %v238 = vld [vmem:[%s216 + $0x28] sm:$0xff]
      %v239 = vld [vmem:[%s216 + $0x30] sm:$0xff]
      %v240 = vld [vmem:[%s216 + $0x38] sm:$0xff]
      %v241 = vld [vmem:[%s216 + $0x40] sm:$0xff]
      %v242 = vld [vmem:[%s216 + $0x48] sm:$0xff]
      %v243 = vld [vmem:[%s216 + $0x50] sm:$0xff]
      %v244 = vld [vmem:[%s216 + $0x58] sm:$0xff]
      %v245 = vld [vmem:[%s216 + $0x60] sm:$0xff]
      %v246 = vld [vmem:[%s216 + $0x68] sm:$0xff]
      %v247 = vld [vmem:[%s216 + $0x70] sm:$0xff]
      %v248 = vld [vmem:[%s216 + $0x78] sm:$0xff]
      %v249 = vld [vmem:[%s222] sm:$0xff]
      %v250 = vld [vmem:[%s222 + $0x8] sm:$0xff]
      %v251 = vld [vmem:[%s222 + $0x10] sm:$0xff]
      %v252 = vld [vmem:[%s222 + $0x18] sm:$0xff]
      %v253 = vld [vmem:[%s222 + $0x20] sm:$0xff]
      %v254 = vld [vmem:[%s222 + $0x28] sm:$0xff]
      %v255 = vld [vmem:[%s222 + $0x30] sm:$0xff]
      %v256 = vld [vmem:[%s222 + $0x38] sm:$0xff]
      %v257 = vld [vmem:[%s222 + $0x40] sm:$0xff]
      %v258 = vld [vmem:[%s222 + $0x48] sm:$0xff]
      %v259 = vld [vmem:[%s222 + $0x50] sm:$0xff]
      %v260 = vld [vmem:[%s222 + $0x58] sm:$0xff]
      %v261 = vld [vmem:[%s222 + $0x60] sm:$0xff]
      %v262 = vld [vmem:[%s222 + $0x68] sm:$0xff]
      %v263 = vld [vmem:[%s222 + $0x70] sm:$0xff]
      %v264 = vld [vmem:[%s222 + $0x78] sm:$0xff]
      %v265 = vld [vmem:[%s222 + $0x80] sm:$0xff]
      %v266 = vld [vmem:[%s222 + $0x88] sm:$0xff]
      %v267 = vld [vmem:[%s222 + $0x90] sm:$0xff]
      %v268 = vld [vmem:[%s222 + $0x98] sm:$0xff]
      %v269 = vld [vmem:[%s222 + $0xa0] sm:$0xff]
      %v270 = vld [vmem:[%s222 + $0xa8] sm:$0xff]
      %v271 = vld [vmem:[%s222 + $0xb0] sm:$0xff]
      %v272 = vld [vmem:[%s222 + $0xb8] sm:$0xff]
      %v273 = vld [vmem:[%s222 + $0xc0] sm:$0xff]
      %v274 = vld [vmem:[%s222 + $0xc8] sm:$0xff]
      %v275 = vld [vmem:[%s222 + $0xd0] sm:$0xff]
      %v276 = vld [vmem:[%s222 + $0xd8] sm:$0xff]
      %v277 = vld [vmem:[%s222 + $0xe0] sm:$0xff]
      %v278 = vld [vmem:[%s222 + $0xe8] sm:$0xff]
      %v279 = vld [vmem:[%s222 + $0xf0] sm:$0xff]
      %v280 = vld [vmem:[%s222 + $0xf8] sm:$0xff]
      %v281 = vld [vmem:[%s222 + $0x100] sm:$0xff]
      %v282 = vld [vmem:[%s222 + $0x108] sm:$0xff]
      %v283 = vld [vmem:[%s222 + $0x110] sm:$0xff]
      %v284 = vld [vmem:[%s222 + $0x118] sm:$0xff]
      %v285 = vld [vmem:[%s222 + $0x120] sm:$0xff]
      %v286 = vld [vmem:[%s222 + $0x128] sm:$0xff]
      %v287 = vld [vmem:[%s222 + $0x130] sm:$0xff]
      %v288 = vld [vmem:[%s222 + $0x138] sm:$0xff]
      %v289 = vld [vmem:[%s222 + $0x140] sm:$0xff]
      %v290 = vld [vmem:[%s222 + $0x148] sm:$0xff]
      %v291 = vld [vmem:[%s222 + $0x150] sm:$0xff]
      %v292 = vld [vmem:[%s222 + $0x158] sm:$0xff]
      %v293 = vld [vmem:[%s222 + $0x160] sm:$0xff]
      %v294 = vld [vmem:[%s222 + $0x168] sm:$0xff]
      %v295 = vld [vmem:[%s222 + $0x170] sm:$0xff]
      %v296 = vld [vmem:[%s222 + $0x178] sm:$0xff]
      %v297 = vld [vmem:[%s222 + $0x180] sm:$0xff]
      %v298 = vld [vmem:[%s222 + $0x188] sm:$0xff]
      %v299 = vld [vmem:[%s222 + $0x190] sm:$0xff]
      %v300 = vld [vmem:[%s222 + $0x198] sm:$0xff]
      %v301 = vld [vmem:[%s222 + $0x1a0] sm:$0xff]
      %v302 = vld [vmem:[%s222 + $0x1a8] sm:$0xff]
      %v303 = vld [vmem:[%s222 + $0x1b0] sm:$0xff]
      %v304 = vld [vmem:[%s222 + $0x1b8] sm:$0xff]
      %v305 = vld [vmem:[%s222 + $0x1c0] sm:$0xff]
      %v306 = vld [vmem:[%s222 + $0x1c8] sm:$0xff]
      %v307 = vld [vmem:[%s222 + $0x1d0] sm:$0xff]
      %v308 = vld [vmem:[%s222 + $0x1d8] sm:$0xff]
      %v309 = vld [vmem:[%s222 + $0x1e0] sm:$0xff]
      %v310 = vld [vmem:[%s222 + $0x1e8] sm:$0xff]
      %v311 = vld [vmem:[%s222 + $0x1f0] sm:$0xff]
      %v312 = vld [vmem:[%s222 + $0x1f8] sm:$0xff]
      %v313 = vld [vmem:[%s2] sm:$0x1]
      %v315 = vperm.slane %v313, 0
      %317 = vmatpush.msra.mxu0 %v264
      %318 = vmatpush.msra.mxu0 %v263
      %319 = vmatpush.msra.mxu0 %v262
      %320 = vmatpush.msra.mxu0 %v261
      %321 = vmatpush.msra.mxu0 %v260
      %322 = vmatpush.msra.mxu0 %v259
      %323 = vmatpush.msra.mxu0 %v258
      %324 = vmatpush.msra.mxu0 %v257
      %325 = vmatpush.msra.mxu0 %v256
      %326 = vmatpush.msra.mxu0 %v255
      %327 = vmatpush.msra.mxu0 %v254
      %328 = vmatpush.msra.mxu0 %v253
      %329 = vmatpush.msra.mxu0 %v252
      %330 = vmatpush.msra.mxu0 %v251
      %331 = vmatpush.msra.mxu0 %v250
      %332 = vmatpush.msra.mxu0 %v249
      %333 = vmatmul.f32.gmra.mxu0 %v233
      %v334 = vpop.f32.mrf.mxu0
      %v335 = vadd.f32 %v315, %v334
      %336 = vmatmul.f32.gmra.mxu0 %v237
      %v337 = vpop.f32.mrf.mxu0
      %v338 = vadd.f32 %v315, %v337
      %339 = vmatmul.f32.gmra.mxu0 %v241
      %v340 = vpop.f32.mrf.mxu0
      %v341 = vadd.f32 %v315, %v340
      %342 = vmatmul.f32.gmra.mxu0 %v245
      %v343 = vpop.f32.mrf.mxu0
      %v344 = vadd.f32 %v315, %v343
      %345 = vdwg.mxu0
      %346 = vmatpush.msra.mxu0 %v280
      %347 = vmatpush.msra.mxu0 %v279
      %348 = vmatpush.msra.mxu0 %v278
      %349 = vmatpush.msra.mxu0 %v277
      %350 = vmatpush.msra.mxu0 %v276
      %351 = vmatpush.msra.mxu0 %v275
      %352 = vmatpush.msra.mxu0 %v274
      %353 = vmatpush.msra.mxu0 %v273
      %354 = vmatpush.msra.mxu0 %v272
      %355 = vmatpush.msra.mxu0 %v271
      %356 = vmatpush.msra.mxu0 %v270
      %357 = vmatpush.msra.mxu0 %v269
      %358 = vmatpush.msra.mxu0 %v268
      %359 = vmatpush.msra.mxu0 %v267
      %360 = vmatpush.msra.mxu0 %v266
      %361 = vmatpush.msra.mxu0 %v265
      %362 = vmatmul.f32.gmra.mxu0 %v234
      %v363 = vpop.f32.mrf.mxu0
      %v364 = vadd.f32 %v335, %v363
      %365 = vmatmul.f32.gmra.mxu0 %v238
      %v366 = vpop.f32.mrf.mxu0
      %v367 = vadd.f32 %v338, %v366
      %368 = vmatmul.f32.gmra.mxu0 %v242
      %v369 = vpop.f32.mrf.mxu0
      %v370 = vadd.f32 %v341, %v369
      %371 = vmatmul.f32.gmra.mxu0 %v246
      %v372 = vpop.f32.mrf.mxu0
      %v373 = vadd.f32 %v344, %v372
      %374 = vdwg.mxu0
      %375 = vmatpush.msra.mxu0 %v296
      %376 = vmatpush.msra.mxu0 %v295
      %377 = vmatpush.msra.mxu0 %v294
      %378 = vmatpush.msra.mxu0 %v293
      %379 = vmatpush.msra.mxu0 %v292
      %380 = vmatpush.msra.mxu0 %v291
      %381 = vmatpush.msra.mxu0 %v290
      %382 = vmatpush.msra.mxu0 %v289
      %383 = vmatpush.msra.mxu0 %v288
      %384 = vmatpush.msra.mxu0 %v287
      %385 = vmatpush.msra.mxu0 %v286
      %386 = vmatpush.msra.mxu0 %v285
      %387 = vmatpush.msra.mxu0 %v284
      %388 = vmatpush.msra.mxu0 %v283
      %389 = vmatpush.msra.mxu0 %v282
      %390 = vmatpush.msra.mxu0 %v281
      %391 = vmatmul.f32.gmra.mxu0 %v235
      %v392 = vpop.f32.mrf.mxu0
      %v393 = vadd.f32 %v364, %v392
      %394 = vmatmul.f32.gmra.mxu0 %v239
      %v395 = vpop.f32.mrf.mxu0
      %v396 = vadd.f32 %v367, %v395
      %397 = vmatmul.f32.gmra.mxu0 %v243
      %v398 = vpop.f32.mrf.mxu0
      %v399 = vadd.f32 %v370, %v398
      %400 = vmatmul.f32.gmra.mxu0 %v247
      %v401 = vpop.f32.mrf.mxu0
      %v402 = vadd.f32 %v373, %v401
      %403 = vdwg.mxu0
      %404 = vmatpush.msra.mxu0 %v312
      %405 = vmatpush.msra.mxu0 %v311
      %406 = vmatpush.msra.mxu0 %v310
      %407 = vmatpush.msra.mxu0 %v309
      %408 = vmatpush.msra.mxu0 %v308
      %409 = vmatpush.msra.mxu0 %v307
      %410 = vmatpush.msra.mxu0 %v306
      %411 = vmatpush.msra.mxu0 %v305
      %412 = vmatpush.msra.mxu0 %v304
      %413 = vmatpush.msra.mxu0 %v303
      %414 = vmatpush.msra.mxu0 %v302
      %415 = vmatpush.msra.mxu0 %v301
      %416 = vmatpush.msra.mxu0 %v300
      %417 = vmatpush.msra.mxu0 %v299
      %418 = vmatpush.msra.mxu0 %v298
      %419 = vmatpush.msra.mxu0 %v297
      %420 = vmatmul.f32.gmra.mxu0 %v236
      %v421 = vpop.f32.mrf.mxu0
      %v422 = vadd.f32 %v393, %v421
      %423 = vmatmul.f32.gmra.mxu0 %v240
      %v424 = vpop.f32.mrf.mxu0
      %v425 = vadd.f32 %v396, %v424
      %426 = vmatmul.f32.gmra.mxu0 %v244
      %v427 = vpop.f32.mrf.mxu0
      %v428 = vadd.f32 %v399, %v427
      %429 = vmatmul.f32.gmra.mxu0 %v248
      %v430 = vpop.f32.mrf.mxu0
      %v431 = vadd.f32 %v402, %v430
      %432 = vdwg.mxu0
      %v433 = vmax.f32 %v422, 0.0
      %v434 = vmax.f32 %v425, 0.0
      %v435 = vmax.f32 %v428, 0.0
      %v436 = vmax.f32 %v431, 0.0
      %vm437 = vcmask 523264
      %438 = vst.msk [vmem:[%s231] sm:$0xff] %vm437, %v433
      %439 = vst.msk [vmem:[%s231 + $0x8] sm:$0xff] %vm437, %v434
      %440 = vst.msk [vmem:[%s231 + $0x10] sm:$0xff] %vm437, %v435
      %441 = vst.msk [vmem:[%s231 + $0x18] sm:$0xff] %vm437, %v436
      %s442 = smul.u32 4, %s19
      %p443 = scmp.lt.s32.totalorder %s18, 3
      %s444 = scalar_select %p443, %s18, 3
      %p445 = scmp.lt.s32.totalorder %s442, 3
      %s446 = scalar_select %p445, %s442, 3
      %s447 = smul.addr %s444, 4
      %s448 = sadd.s32 %s446, %s447
      %s449 = smul.addr %s448, 8
      %s450 = scalar_lea.vmem %s3, %s449
      // Predicated region
      $region33: #{compnet_forward_pallas.6} parent=31 // pred_check
        %p451 = pneg %p121
      $region34: #{compnet_forward_pallas.6} parent=31 // pred_check_branch
        %453 = sbr.rel (%p451) target = $region36
      $region35: #{compnet_forward_pallas.6} parent=31 // pred_region
        %s454 = smul.u32 4, %s19
      $region36: #{compnet_forward_pallas.6} parent=31 // pred_fallthru
        _
    $region32: #{compnet_forward_pallas.6} parent=5 // pred_fallthru
      _
    %p455 = scmp.le.s32.totalorder 2, %s9
    // Predicated region
    $region37: #{compnet_forward_pallas.6} parent=5 // pred_check
      %p456 = pneg %p455
    $region38: #{compnet_forward_pallas.6} parent=5 // pred_check_branch
      %458 = sbr.rel (%p456) target = $region40
    $region39: #{compnet_forward_pallas.6} parent=5 // pred_region
      %s459 = ssub.s32 %s9, 2
      // Predicated region
      $region41: #{compnet_forward_pallas.6} parent=39 // pred_check
        %p460 = pneg %p127
      $region42: #{compnet_forward_pallas.6} parent=39 // pred_check_branch
        %462 = sbr.rel (%p460) target = $region44
      $region43: #{compnet_forward_pallas.6} parent=39 // pred_region
        %s463 = smul.u32 4, %s21
        %p464 = scmp.lt.s32.totalorder %s20, 3
        %s465 = scalar_select %p464, %s20, 3
        %p466 = scmp.lt.s32.totalorder %s463, 3
        %s467 = scalar_select %p466, %s463, 3
        %s468 = smul.addr %s465, 4
        %s469 = sadd.s32 %s467, %s468
        %s470 = smul.addr %s469, 8
        %s471 = scalar_lea.vmem %s3, %s470
      $region44: #{compnet_forward_pallas.6} parent=39 // pred_fallthru
        _
    $region40: #{compnet_forward_pallas.6} parent=5 // pred_fallthru
      _
  $region6: #{compnet_forward_pallas.6} parent=0 // loop_footer
    %s13 = sadd.s32 1, %s9
  $region7: #{compnet_forward_pallas.6} parent=0 // loop_footer_branch
    %8 = sbr.rel target = $region3
  $region8: #{compnet_forward_pallas.6} parent=0 // loop_exit
    _

// kernel: compnet_forward_pallas.7
$region0: #{compnet_forward_pallas.7}
  #allocation0 [shape = 'u32[]', space=smem, size = 0x4, offset = 0x4, fixed_abs, tag = 'smem constant byte address 0x4 - core index']
  #allocation1 [shape = 'u32[72,128]{1,0:T(1,128)}', space=vmem, size = 0x9000, scoped, tag = 'internal scratch']
  %s0 = inlined_call_operand.vmem [shape: f32[4,128,256], index: 0, kind: input, shape index: {}]
  %s1 = inlined_call_operand.vmem [shape: f32[4,256,128], index: 1, kind: input, shape index: {}]
  %s2 = inlined_call_operand.vmem [shape: f32[1,128], index: 2, kind: input, shape index: {}]
  %s3 = inlined_call_operand.vmem [shape: f32[4,128,3], index: 3, kind: output, shape index: {}]
  %s4 = sld [smem:[#allocation0]]
  $region45: #{compnet_forward_pallas.7} parent=0
    _
  %s6 = ssub.s32 1, %s4
  %s7 = scalar_select 0, %s6, %s4
  loop: start=0, step=1, limit=6
  $region2: #{compnet_forward_pallas.7} parent=0 // loop_pre_header
    _
  $region3: #{compnet_forward_pallas.7} parent=0 // loop_header
    %s9 = sphi 0, %s13
    %p10 = scmp.ge.s32.totalorder %s9, 6
    %s16 = sphi 0, %s28
    %s17 = sphi 0, %s24
    %s18 = sphi 0, %s16
    %s19 = sphi 0, %s17
    %s20 = sphi 0, %s18
    %s21 = sphi 0, %s19
    %s33 = sphi 0, %s35
    %s36 = sphi 0, %s33
    %s37 = sphi 0, %s36
    %s53 = sphi 0, %s37
    %s59 = sphi 0, %s61
    %s62 = sphi 0, %s59
    %s63 = sphi 0, %s62
    %s79 = sphi 0, %s63
    %s83 = sphi 0, %s83
    %s85 = sphi 0, %s83
    %s86 = sphi 0, %s85
    %s100 = sphi 0, %s86
    %s108 = sphi 0, %s110
    %s111 = sphi 0, %s108
    %s112 = sphi 0, %s111
    %s128 = sphi 0, %s112
  $region4: #{compnet_forward_pallas.7} parent=0 // loop_header_branch
    %12 = sbr.rel (%p10) target = $region8
  $region5: #{compnet_forward_pallas.7} parent=0 // loop_body
    %s14 = ssub.s32 %s9, 1
    %s15 = ssub.s32 %s9, 2
    %s22 = sadd.s32 1, %s17
    %p23 = scmp.ge.s32.totalorder %s22, 1
    %s24 = scalar_select %p23, 0, %s22
    %s25 = sadd.s32 1, %s16
    %s26 = scalar_select %p23, %s25, %s16
    %p27 = scmp.ge.s32.totalorder %s26, 4
    %s28 = scalar_select %p27, 0, %s26
    %s29 = ssub.s32 %s16, %s28
    %s30 = ssub.s32 %s17, %s24
    %s31 = sor.u32 %s29, %s30
    %p32 = scmp.eq.s32.totalorder %s31, 0
    %s34 = sadd.s32 %s33, 1
    %s35 = scalar_select %p32, %s33, %s34
    %p38 = pneg %p32
    %p39 = scmp.eq.s32.totalorder %s9, 3
    %p40 = por %p38, %p39
    %p41 = scmp.ne.s32.totalorder %s33, %s36
    %p42 = scmp.eq.s32.totalorder %s9, 0
    %p43 = por %p41, %p42
    %p44 = scmp.ne.s32.totalorder %s33, %s36
    %p45 = scmp.eq.s32.totalorder %s14, 3
    %p46 = por %p44, %p45
    %p47 = scmp.ne.s32.totalorder %s36, %s37
    %p48 = scmp.eq.s32.totalorder %s14, 0
    %p49 = por %p47, %p48
    %p50 = scmp.ne.s32.totalorder %s36, %s37
    %p51 = scmp.eq.s32.totalorder %s15, 3
    %p52 = por %p50, %p51
    %p54 = scmp.ne.s32.totalorder %s37, %s53
    %p55 = scmp.eq.s32.totalorder %s15, 0
    %p56 = por %p54, %p55
    %s57 = ssub.s32 %s16, %s28
    %p58 = scmp.eq.s32.totalorder %s57, 0
    %s60 = sadd.s32 %s59, 1
    %s61 = scalar_select %p58, %s59, %s60
    %p64 = pneg %p58
    %p65 = scmp.eq.s32.totalorder %s9, 3
    %p66 = por %p64, %p65
    %p67 = scmp.ne.s32.totalorder %s59, %s62
    %p68 = scmp.eq.s32.totalorder %s9, 0
    %p69 = por %p67, %p68
    %p70 = scmp.ne.s32.totalorder %s59, %s62
    %p71 = scmp.eq.s32.totalorder %s14, 3
    %p72 = por %p70, %p71
    %p73 = scmp.ne.s32.totalorder %s62, %s63
    %p74 = scmp.eq.s32.totalorder %s14, 0
    %p75 = por %p73, %p74
    %p76 = scmp.ne.s32.totalorder %s62, %s63
    %p77 = scmp.eq.s32.totalorder %s15, 3
    %p78 = por %p76, %p77
    %p80 = scmp.ne.s32.totalorder %s63, %s79
    %p81 = scmp.eq.s32.totalorder %s15, 0
    %p82 = por %p80, %p81
    %s84 = sadd.s32 %s83, 1
    %p87 = scmp.eq.s32.totalorder %s9, 3
    %p88 = scmp.ne.s32.totalorder %s83, %s85
    %p89 = scmp.eq.s32.totalorder %s9, 0
    %p90 = por %p88, %p89
    %p91 = scmp.ne.s32.totalorder %s83, %s85
    %p92 = scmp.eq.s32.totalorder %s14, 3
    %p93 = por %p91, %p92
    %p94 = scmp.ne.s32.totalorder %s85, %s86
    %p95 = scmp.eq.s32.totalorder %s14, 0
    %p96 = por %p94, %p95
    %p97 = scmp.ne.s32.totalorder %s85, %s86
    %p98 = scmp.eq.s32.totalorder %s15, 3
    %p99 = por %p97, %p98
    %p101 = scmp.ne.s32.totalorder %s86, %s100
    %p102 = scmp.eq.s32.totalorder %s15, 0
    %p103 = por %p101, %p102
    %s104 = ssub.s32 %s16, %s28
    %s105 = ssub.s32 %s17, %s24
    %s106 = sor.u32 %s104, %s105
    %p107 = scmp.eq.s32.totalorder %s106, 0
    %s109 = sadd.s32 %s108, 1
    %s110 = scalar_select %p107, %s108, %s109
    %p113 = pneg %p107
    %p114 = scmp.eq.s32.totalorder %s9, 3
    %p115 = por %p113, %p114
    %p116 = scmp.ne.s32.totalorder %s108, %s111
    %p117 = scmp.eq.s32.totalorder %s9, 0
    %p118 = por %p116, %p117
    %p119 = scmp.ne.s32.totalorder %s108, %s111
    %p120 = scmp.eq.s32.totalorder %s14, 3
    %p121 = por %p119, %p120
    %p122 = scmp.ne.s32.totalorder %s111, %s112
    %p123 = scmp.eq.s32.totalorder %s14, 0
    %p124 = por %p122, %p123
    %p125 = scmp.ne.s32.totalorder %s111, %s112
    %p126 = scmp.eq.s32.totalorder %s15, 3
    %p127 = por %p125, %p126
    %p129 = scmp.ne.s32.totalorder %s112, %s128
    %p130 = scmp.eq.s32.totalorder %s15, 0
    %p131 = por %p129, %p130
    %p132 = scmp.le.s32.totalorder 1, %s9
    %p133 = scmp.lt.s32.totalorder %s9, 5
    %p134 = pnand %p132, %p133
    %p135 = pneg %p134
    // Predicated region
    $region9: #{compnet_forward_pallas.7} parent=5 // pred_check
      _
    $region10: #{compnet_forward_pallas.7} parent=5 // pred_check_branch
      %137 = sbr.rel (%p134) target = $region12
    $region11: #{compnet_forward_pallas.7} parent=5 // pred_region
      %s138 = ssub.s32 %s9, 1
      // Predicated region
      $region13: #{compnet_forward_pallas.7} parent=11 // pred_check
        %p139 = pneg %p96
      $region14: #{compnet_forward_pallas.7} parent=11 // pred_check_branch
        %141 = sbr.rel (%p139) target = $region16
      $region15: #{compnet_forward_pallas.7} parent=11 // pred_region
        _
      $region16: #{compnet_forward_pallas.7} parent=11 // pred_fallthru
        _
    $region12: #{compnet_forward_pallas.7} parent=5 // pred_fallthru
      _
    %p142 = scmp.lt.s32.totalorder %s9, 4
    // Predicated region
    $region17: #{compnet_forward_pallas.7} parent=5 // pred_check
      %p143 = pneg %p142
    $region18: #{compnet_forward_pallas.7} parent=5 // pred_check_branch
      %145 = sbr.rel (%p143) target = $region20
    $region19: #{compnet_forward_pallas.7} parent=5 // pred_region
      // Predicated region
      $region21: #{compnet_forward_pallas.7} parent=19 // pred_check
        %p146 = pneg %p43
      $region22: #{compnet_forward_pallas.7} parent=19 // pred_check_branch
        %148 = sbr.rel (%p146) target = $region24
      $region23: #{compnet_forward_pallas.7} parent=19 // pred_region
        %s149 = smul.u32 16, %s17
        %p150 = scmp.lt.s32.totalorder %s16, 3
        %s151 = scalar_select %p150, %s16, 3
        %p152 = scmp.lt.s32.totalorder %s149, 15
        %s153 = scalar_select %p152, %s149, 15
        %s154 = smul.addr %s153, 2
        %s155 = smul.addr %s151, 32
        %s156 = sadd.s32 %s154, %s155
        %s157 = smul.addr %s156, 8
        %s158 = scalar_lea.vmem %s0, %s157
        %s159 = smul.u32 16, %s17
      $region24: #{compnet_forward_pallas.7} parent=19 // pred_fallthru
        _
      // Predicated region
      $region25: #{compnet_forward_pallas.7} parent=19 // pred_check
        %p160 = pneg %p69
      $region26: #{compnet_forward_pallas.7} parent=19 // pred_check_branch
        %162 = sbr.rel (%p160) target = $region28
      $region27: #{compnet_forward_pallas.7} parent=19 // pred_region
        %p163 = scmp.lt.s32.totalorder %s16, 3
        %s164 = scalar_select %p163, %s16, 3
        %s165 = smul.addr %s164, 32
        %s166 = smul.addr %s165, 8
        %s167 = scalar_lea.vmem %s1, %s166
      $region28: #{compnet_forward_pallas.7} parent=19 // pred_fallthru
        _
    $region20: #{compnet_forward_pallas.7} parent=5 // pred_fallthru
      _
    %p168 = scmp.le.s32.totalorder 1, %s9
    %p169 = scmp.lt.s32.totalorder %s9, 5
    %p170 = pnand %p168, %p169
    %p171 = pneg %p170
    // Predicated region
    $region29: #{compnet_forward_pallas.7} parent=5 // pred_check
      _
    $region30: #{compnet_forward_pallas.7} parent=5 // pred_check_branch
      %173 = sbr.rel (%p170) target = $region32
    $region31: #{compnet_forward_pallas.7} parent=5 // pred_region
      %s174 = ssub.s32 %s9, 1
      %s175 = smul.u32 16, %s19
      %p176 = scmp.lt.s32.totalorder %s18, 3
      %s177 = scalar_select %p176, %s18, 3
      %p178 = scmp.lt.s32.totalorder %s175, 15
      %s179 = scalar_select %p178, %s175, 15
      %s180 = smul.addr %s179, 2
      %s181 = smul.addr %s177, 32
      %s182 = sadd.s32 %s180, %s181
      %s183 = smul.addr %s182, 8
      %s184 = scalar_lea.vmem %s0, %s183
      %p185 = pneg %p49
      %p186 = pneg %p46
      %p187 = scmp.lt.s32.totalorder %s18, 3
      %s188 = scalar_select %p187, %s18, 3
      %s189 = smul.addr %s188, 32
      %s190 = smul.addr %s189, 8
      %s191 = scalar_lea.vmem %s1, %s190
      %p192 = pneg %p75
      %p193 = pneg %p72
      %p194 = pneg %p96
      %p195 = pneg %p93
      %p196 = pneg %p124
      %p197 = pneg %p121
      %s198 = smul.u32 16, %s19
      %p199 = scmp.lt.s32.totalorder %s18, 3
      %s200 = scalar_select %p199, %s18, 3
      %p201 = scmp.lt.s32.totalorder %s198, 15
      %s202 = scalar_select %p201, %s198, 15
      %s203 = smul.addr %s200, 16
      %s204 = sadd.s32 %s202, %s203
      %s205 = smul.addr %s204, 8
      %s206 = scalar_lea.vmem %s3, %s205
      %s207 = smul.u32 16, %s19
      %p208 = scmp.lt.s32.totalorder %s18, 3
      %s209 = scalar_select %p208, %s18, 3
      %p210 = scmp.lt.s32.totalorder %s207, 15
      %s211 = scalar_select %p210, %s207, 15
      %s212 = smul.addr %s211, 2
      %s213 = smul.addr %s209, 32
      %s214 = sadd.s32 %s212, %s213
      %s215 = smul.addr %s214, 8
      %s216 = scalar_lea.vmem %s0, %s215
      %s217 = smul.u32 16, %s19
      %p218 = scmp.lt.s32.totalorder %s18, 3
      %s219 = scalar_select %p218, %s18, 3
      %s220 = smul.addr %s219, 32
      %s221 = smul.addr %s220, 8
      %s222 = scalar_lea.vmem %s1, %s221
      %s223 = smul.u32 16, %s19
      %p224 = scmp.lt.s32.totalorder %s18, 3
      %s225 = scalar_select %p224, %s18, 3
      %p226 = scmp.lt.s32.totalorder %s223, 15
      %s227 = scalar_select %p226, %s223, 15
      %s228 = smul.addr %s225, 16
      %s229 = sadd.s32 %s227, %s228
      %s230 = smul.addr %s229, 8
      %s231 = scalar_lea.vmem %s3, %s230
      %s232 = smul.u32 16, %s19
      %v233 = vld [vmem:[%s216] sm:$0xff]
      %v234 = vld [vmem:[%s216 + $0x8] sm:$0xff]
      %v235 = vld [vmem:[%s216 + $0x10] sm:$0xff]
      %v236 = vld [vmem:[%s216 + $0x18] sm:$0xff]
      %v237 = vld [vmem:[%s216 + $0x20] sm:$0xff]
      %v238 = vld [vmem:[%s216 + $0x28] sm:$0xff]
      %v239 = vld [vmem:[%s216 + $0x30] sm:$0xff]
      %v240 = vld [vmem:[%s216 + $0x38] sm:$0xff]
      %v241 = vld [vmem:[%s216 + $0x40] sm:$0xff]
      %v242 = vld [vmem:[%s216 + $0x48] sm:$0xff]
      %v243 = vld [vmem:[%s216 + $0x50] sm:$0xff]
      %v244 = vld [vmem:[%s216 + $0x58] sm:$0xff]
      %v245 = vld [vmem:[%s216 + $0x60] sm:$0xff]
      %v246 = vld [vmem:[%s216 + $0x68] sm:$0xff]
      %v247 = vld [vmem:[%s216 + $0x70] sm:$0xff]
      %v248 = vld [vmem:[%s216 + $0x78] sm:$0xff]
      %v249 = vld [vmem:[%s216 + $0x80] sm:$0xff]
      %v250 = vld [vmem:[%s216 + $0x88] sm:$0xff]
      %v251 = vld [vmem:[%s216 + $0x90] sm:$0xff]
      %v252 = vld [vmem:[%s216 + $0x98] sm:$0xff]
      %v253 = vld [vmem:[%s216 + $0xa0] sm:$0xff]
      %v254 = vld [vmem:[%s216 + $0xa8] sm:$0xff]
      %v255 = vld [vmem:[%s216 + $0xb0] sm:$0xff]
      %v256 = vld [vmem:[%s216 + $0xb8] sm:$0xff]
      %v257 = vld [vmem:[%s216 + $0xc0] sm:$0xff]
      %v258 = vld [vmem:[%s216 + $0xc8] sm:$0xff]
      %v259 = vld [vmem:[%s216 + $0xd0] sm:$0xff]
      %v260 = vld [vmem:[%s216 + $0xd8] sm:$0xff]
      %v261 = vld [vmem:[%s216 + $0xe0] sm:$0xff]
      %v262 = vld [vmem:[%s216 + $0xe8] sm:$0xff]
      %v263 = vld [vmem:[%s216 + $0xf0] sm:$0xff]
      %v264 = vld [vmem:[%s216 + $0xf8] sm:$0xff]
      %v265 = vld [vmem:[%s222] sm:$0xff]
      %v266 = vld [vmem:[%s222 + $0x8] sm:$0xff]
      %v267 = vld [vmem:[%s222 + $0x10] sm:$0xff]
      %v268 = vld [vmem:[%s222 + $0x18] sm:$0xff]
      %v269 = vld [vmem:[%s222 + $0x20] sm:$0xff]
      %v270 = vld [vmem:[%s222 + $0x28] sm:$0xff]
      %v271 = vld [vmem:[%s222 + $0x30] sm:$0xff]
      %v272 = vld [vmem:[%s222 + $0x38] sm:$0xff]
      %v273 = vld [vmem:[%s222 + $0x40] sm:$0xff]
      %v274 = vld [vmem:[%s222 + $0x48] sm:$0xff]
      %v275 = vld [vmem:[%s222 + $0x50] sm:$0xff]
      %v276 = vld [vmem:[%s222 + $0x58] sm:$0xff]
      %v277 = vld [vmem:[%s222 + $0x60] sm:$0xff]
      %v278 = vld [vmem:[%s222 + $0x68] sm:$0xff]
      %v279 = vld [vmem:[%s222 + $0x70] sm:$0xff]
      %v280 = vld [vmem:[%s222 + $0x78] sm:$0xff]
      %v281 = vld [vmem:[%s222 + $0x80] sm:$0xff]
      %v282 = vld [vmem:[%s222 + $0x88] sm:$0xff]
      %v283 = vld [vmem:[%s222 + $0x90] sm:$0xff]
      %v284 = vld [vmem:[%s222 + $0x98] sm:$0xff]
      %v285 = vld [vmem:[%s222 + $0xa0] sm:$0xff]
      %v286 = vld [vmem:[%s222 + $0xa8] sm:$0xff]
      %v287 = vld [vmem:[%s222 + $0xb0] sm:$0xff]
      %v288 = vld [vmem:[%s222 + $0xb8] sm:$0xff]
      %v289 = vld [vmem:[%s222 + $0xc0] sm:$0xff]
      %v290 = vld [vmem:[%s222 + $0xc8] sm:$0xff]
      %v291 = vld [vmem:[%s222 + $0xd0] sm:$0xff]
      %v292 = vld [vmem:[%s222 + $0xd8] sm:$0xff]
      %v293 = vld [vmem:[%s222 + $0xe0] sm:$0xff]
      %v294 = vld [vmem:[%s222 + $0xe8] sm:$0xff]
      %v295 = vld [vmem:[%s222 + $0xf0] sm:$0xff]
      %v296 = vld [vmem:[%s222 + $0xf8] sm:$0xff]
      %v297 = vld [vmem:[%s2] sm:$0x1]
      %v299 = vperm.slane %v297, 0
      %301 = vmatpush.msra.mxu0 %v280
      %302 = vmatpush.msra.mxu0 %v279
      %303 = vmatpush.msra.mxu0 %v278
      %304 = vmatpush.msra.mxu0 %v277
      %305 = vmatpush.msra.mxu0 %v276
      %306 = vmatpush.msra.mxu0 %v275
      %307 = vmatpush.msra.mxu0 %v274
      %308 = vmatpush.msra.mxu0 %v273
      %309 = vmatpush.msra.mxu0 %v272
      %310 = vmatpush.msra.mxu0 %v271
      %311 = vmatpush.msra.mxu0 %v270
      %312 = vmatpush.msra.mxu0 %v269
      %313 = vmatpush.msra.mxu0 %v268
      %314 = vmatpush.msra.mxu0 %v267
      %315 = vmatpush.msra.mxu0 %v266
      %316 = vmatpush.msra.mxu0 %v265
      %317 = vmatmul.f32.gmra.mxu0 %v233
      %v318 = vpop.f32.mrf.mxu0
      %v319 = vadd.f32 %v299, %v318
      %320 = vmatmul.f32.gmra.mxu0 %v235
      %v321 = vpop.f32.mrf.mxu0
      %v322 = vadd.f32 %v299, %v321
      %323 = vmatmul.f32.gmra.mxu0 %v237
      %v324 = vpop.f32.mrf.mxu0
      %v325 = vadd.f32 %v299, %v324
      %326 = vmatmul.f32.gmra.mxu0 %v239
      %v327 = vpop.f32.mrf.mxu0
      %v328 = vadd.f32 %v299, %v327
      %329 = vmatmul.f32.gmra.mxu0 %v241
      %v330 = vpop.f32.mrf.mxu0
      %v331 = vadd.f32 %v299, %v330
      %332 = vmatmul.f32.gmra.mxu0 %v243
      %v333 = vpop.f32.mrf.mxu0
      %v334 = vadd.f32 %v299, %v333
      %335 = vmatmul.f32.gmra.mxu0 %v245
      %v336 = vpop.f32.mrf.mxu0
      %v337 = vadd.f32 %v299, %v336
      %338 = vmatmul.f32.gmra.mxu0 %v247
      %v339 = vpop.f32.mrf.mxu0
      %v340 = vadd.f32 %v299, %v339
      %341 = vmatmul.f32.gmra.mxu0 %v249
      %v342 = vpop.f32.mrf.mxu0
      %v343 = vadd.f32 %v299, %v342
      %344 = vmatmul.f32.gmra.mxu0 %v251
      %v345 = vpop.f32.mrf.mxu0
      %v346 = vadd.f32 %v299, %v345
      %347 = vmatmul.f32.gmra.mxu0 %v253
      %v348 = vpop.f32.mrf.mxu0
      %v349 = vadd.f32 %v299, %v348
      %350 = vmatmul.f32.gmra.mxu0 %v255
      %v351 = vpop.f32.mrf.mxu0
      %v352 = vadd.f32 %v299, %v351
      %353 = vmatmul.f32.gmra.mxu0 %v257
      %v354 = vpop.f32.mrf.mxu0
      %v355 = vadd.f32 %v299, %v354
      %356 = vmatmul.f32.gmra.mxu0 %v259
      %v357 = vpop.f32.mrf.mxu0
      %v358 = vadd.f32 %v299, %v357
      %359 = vmatmul.f32.gmra.mxu0 %v261
      %v360 = vpop.f32.mrf.mxu0
      %v361 = vadd.f32 %v299, %v360
      %362 = vmatmul.f32.gmra.mxu0 %v263
      %v363 = vpop.f32.mrf.mxu0
      %v364 = vadd.f32 %v299, %v363
      %365 = vdwg.mxu0
      %366 = vmatpush.msra.mxu0 %v296
      %367 = vmatpush.msra.mxu0 %v295
      %368 = vmatpush.msra.mxu0 %v294
      %369 = vmatpush.msra.mxu0 %v293
      %370 = vmatpush.msra.mxu0 %v292
      %371 = vmatpush.msra.mxu0 %v291
      %372 = vmatpush.msra.mxu0 %v290
      %373 = vmatpush.msra.mxu0 %v289
      %374 = vmatpush.msra.mxu0 %v288
      %375 = vmatpush.msra.mxu0 %v287
      %376 = vmatpush.msra.mxu0 %v286
      %377 = vmatpush.msra.mxu0 %v285
      %378 = vmatpush.msra.mxu0 %v284
      %379 = vmatpush.msra.mxu0 %v283
      %380 = vmatpush.msra.mxu0 %v282
      %381 = vmatpush.msra.mxu0 %v281
      %382 = vmatmul.f32.gmra.mxu0 %v234
      %v383 = vpop.f32.mrf.mxu0
      %v384 = vadd.f32 %v319, %v383
      %385 = vmatmul.f32.gmra.mxu0 %v236
      %v386 = vpop.f32.mrf.mxu0
      %v387 = vadd.f32 %v322, %v386
      %388 = vmatmul.f32.gmra.mxu0 %v238
      %v389 = vpop.f32.mrf.mxu0
      %v390 = vadd.f32 %v325, %v389
      %391 = vmatmul.f32.gmra.mxu0 %v240
      %v392 = vpop.f32.mrf.mxu0
      %v393 = vadd.f32 %v328, %v392
      %394 = vmatmul.f32.gmra.mxu0 %v242
      %v395 = vpop.f32.mrf.mxu0
      %v396 = vadd.f32 %v331, %v395
      %397 = vmatmul.f32.gmra.mxu0 %v244
      %v398 = vpop.f32.mrf.mxu0
      %v399 = vadd.f32 %v334, %v398
      %400 = vmatmul.f32.gmra.mxu0 %v246
      %v401 = vpop.f32.mrf.mxu0
      %v402 = vadd.f32 %v337, %v401
      %403 = vmatmul.f32.gmra.mxu0 %v248
      %v404 = vpop.f32.mrf.mxu0
      %v405 = vadd.f32 %v340, %v404
      %406 = vmatmul.f32.gmra.mxu0 %v250
      %v407 = vpop.f32.mrf.mxu0
      %v408 = vadd.f32 %v343, %v407
      %409 = vmatmul.f32.gmra.mxu0 %v252
      %v410 = vpop.f32.mrf.mxu0
      %v411 = vadd.f32 %v346, %v410
      %412 = vmatmul.f32.gmra.mxu0 %v254
      %v413 = vpop.f32.mrf.mxu0
      %v414 = vadd.f32 %v349, %v413
      %415 = vmatmul.f32.gmra.mxu0 %v256
      %v416 = vpop.f32.mrf.mxu0
      %v417 = vadd.f32 %v352, %v416
      %418 = vmatmul.f32.gmra.mxu0 %v258
      %v419 = vpop.f32.mrf.mxu0
      %v420 = vadd.f32 %v355, %v419
      %421 = vmatmul.f32.gmra.mxu0 %v260
      %v422 = vpop.f32.mrf.mxu0
      %v423 = vadd.f32 %v358, %v422
      %424 = vmatmul.f32.gmra.mxu0 %v262
      %v425 = vpop.f32.mrf.mxu0
      %v426 = vadd.f32 %v361, %v425
      %427 = vmatmul.f32.gmra.mxu0 %v264
      %v428 = vpop.f32.mrf.mxu0
      %v429 = vadd.f32 %v364, %v428
      %430 = vdwg.mxu0
      %v431 = vtanh.pop %v384
      %v432 = vtanh.pop %v387
      %v433 = vtanh.pop %v390
      %v434 = vtanh.pop %v393
      %v435 = vtanh.pop %v396
      %v436 = vtanh.pop %v399
      %v437 = vtanh.pop %v402
      %v438 = vtanh.pop %v405
      %v439 = vtanh.pop %v408
      %v440 = vtanh.pop %v411
      %v441 = vtanh.pop %v414
      %v442 = vtanh.pop %v417
      %v443 = vtanh.pop %v420
      %v444 = vtanh.pop %v423
      %v445 = vtanh.pop %v426
      %v446 = vtanh.pop %v429
      %vm447 = vcmask 23552
      %448 = vst.msk [vmem:[%s231] sm:$0xff] %vm447, %v431
      %449 = vst.msk [vmem:[%s231 + $0x8] sm:$0xff] %vm447, %v432
      %450 = vst.msk [vmem:[%s231 + $0x10] sm:$0xff] %vm447, %v433
      %451 = vst.msk [vmem:[%s231 + $0x18] sm:$0xff] %vm447, %v434
      %452 = vst.msk [vmem:[%s231 + $0x20] sm:$0xff] %vm447, %v435
      %453 = vst.msk [vmem:[%s231 + $0x28] sm:$0xff] %vm447, %v436
      %454 = vst.msk [vmem:[%s231 + $0x30] sm:$0xff] %vm447, %v437
      %455 = vst.msk [vmem:[%s231 + $0x38] sm:$0xff] %vm447, %v438
      %456 = vst.msk [vmem:[%s231 + $0x40] sm:$0xff] %vm447, %v439
      %457 = vst.msk [vmem:[%s231 + $0x48] sm:$0xff] %vm447, %v440
      %458 = vst.msk [vmem:[%s231 + $0x50] sm:$0xff] %vm447, %v441
      %459 = vst.msk [vmem:[%s231 + $0x58] sm:$0xff] %vm447, %v442
      %460 = vst.msk [vmem:[%s231 + $0x60] sm:$0xff] %vm447, %v443
      %461 = vst.msk [vmem:[%s231 + $0x68] sm:$0xff] %vm447, %v444
      %462 = vst.msk [vmem:[%s231 + $0x70] sm:$0xff] %vm447, %v445
      %463 = vst.msk [vmem:[%s231 + $0x78] sm:$0xff] %vm447, %v446
      %s464 = smul.u32 16, %s19
      %p465 = scmp.lt.s32.totalorder %s18, 3
      %s466 = scalar_select %p465, %s18, 3
      %p467 = scmp.lt.s32.totalorder %s464, 15
      %s468 = scalar_select %p467, %s464, 15
      %s469 = smul.addr %s466, 16
      %s470 = sadd.s32 %s468, %s469
      %s471 = smul.addr %s470, 8
      %s472 = scalar_lea.vmem %s3, %s471
      // Predicated region
      $region33: #{compnet_forward_pallas.7} parent=31 // pred_check
        %p473 = pneg %p121
      $region34: #{compnet_forward_pallas.7} parent=31 // pred_check_branch
        %475 = sbr.rel (%p473) target = $region36
      $region35: #{compnet_forward_pallas.7} parent=31 // pred_region
        %s476 = smul.u32 16, %s19
      $region36: #{compnet_forward_pallas.7} parent=31 // pred_fallthru
        _
    $region32: #{compnet_forward_pallas.7} parent=5 // pred_fallthru
      _
    %p477 = scmp.le.s32.totalorder 2, %s9
    // Predicated region
    $region37: #{compnet_forward_pallas.7} parent=5 // pred_check
      %p478 = pneg %p477
    $region38: #{compnet_forward_pallas.7} parent=5 // pred_check_branch
      %480 = sbr.rel (%p478) target = $region40
    $region39: #{compnet_forward_pallas.7} parent=5 // pred_region
      %s481 = ssub.s32 %s9, 2
      // Predicated region
      $region41: #{compnet_forward_pallas.7} parent=39 // pred_check
        %p482 = pneg %p127
      $region42: #{compnet_forward_pallas.7} parent=39 // pred_check_branch
        %484 = sbr.rel (%p482) target = $region44
      $region43: #{compnet_forward_pallas.7} parent=39 // pred_region
        %s485 = smul.u32 16, %s21
        %p486 = scmp.lt.s32.totalorder %s20, 3
        %s487 = scalar_select %p486, %s20, 3
        %p488 = scmp.lt.s32.totalorder %s485, 15
        %s489 = scalar_select %p488, %s485, 15
        %s490 = smul.addr %s487, 16
        %s491 = sadd.s32 %s489, %s490
        %s492 = smul.addr %s491, 8
        %s493 = scalar_lea.vmem %s3, %s492
      $region44: #{compnet_forward_pallas.7} parent=39 // pred_fallthru
        _
    $region40: #{compnet_forward_pallas.7} parent=5 // pred_fallthru
      _
  $region6: #{compnet_forward_pallas.7} parent=0 // loop_footer
    %s13 = sadd.s32 1, %s9
  $region7: #{compnet_forward_pallas.7} parent=0 // loop_footer_branch
    %8 = sbr.rel target = $region3
  $region8: #{compnet_forward_pallas.7} parent=0 // loop_exit
    _

</llo_original>
